<compile_context>
chip_gen: v7x
topology: tpu7x:2x2x1
jax: 0.10.0
libtpu: 0.0.40
codegen_flags: <defaults>
</compile_context>

<pallas_src>
import functools

import jax
import jax.numpy as jnp
from jax import lax
from jax.experimental import pallas as pl
from jax.experimental.pallas import tpu as pltpu


_MASK_VALUE = -1e30  # large finite negative: exp underflows to exactly 0, no inf/nan path


def _round_up(x, m):
    return ((x + m - 1) // m) * m


def _cross_attn_kernel(hs_ref, k_ref, v_ref, wq_ref, wo_ref, bo_ref,
                       out_ref, attn_scratch, *,
                       heads, dim_head, scale, l_actual, l_pad, mxu_dtype):
    """One (batch, S-tile) step: Q projection, per-head softmax(QK^T)@V written into a
    VMEM scratch at column offsets, then a single full-K output projection + bias."""
    x = hs_ref[0].astype(mxu_dtype)                                     # (TS, Dq)

    # Full-width Q projection; fold the softmax scale into q (cheaper than scaling
    # the (TS, L) score matrix).
    q = jnp.dot(x, wq_ref[...], preferred_element_type=jnp.float32)     # (TS, inner)
    q = (q * scale).astype(mxu_dtype)

    k = k_ref[0]                                                        # (L_pad, inner) bf16
    v = v_ref[0]                                                        # (L_pad, inner) bf16

    # Contract the last dims of both operands == q @ k.T without an in-kernel transpose.
    dn = (((1,), (1,)), ((), ()))

    # Static loop over heads; each head's (TS, L) f32 score/prob temporaries are fully
    # consumed by the scratch store before the next head starts (bounded live ranges,
    # no jnp.concatenate / XLU relayout chain).
    for h in range(heads):
        sl = slice(h * dim_head, (h + 1) * dim_head)
        s = lax.dot_general(q[:, sl], k[:, sl], dn,
                            preferred_element_type=jnp.float32)         # (TS, L_pad) f32
        if l_pad != l_actual:  # static: mask zero-padded key columns before exp
            col = lax.broadcasted_iota(jnp.int32, s.shape, 1)
            s = jnp.where(col < l_actual, s, _MASK_VALUE)
        s = s - jnp.max(s, axis=-1, keepdims=True)
        p = jnp.exp(s)
        inv_denom = pl.reciprocal(jnp.sum(p, axis=-1, keepdims=True), approx=True)
        probs = (p * inv_denom).astype(mxu_dtype)
        attn_scratch[:, sl] = jnp.dot(probs, v[:, sl],
                                      preferred_element_type=jnp.float32)  # (TS, dh) f32

    # Single output projection over the full inner_dim (full MXU contraction depth) + bias.
    attn = attn_scratch[...].astype(mxu_dtype)                           # (TS, inner)
    out = jnp.dot(attn, wo_ref[...], preferred_element_type=jnp.float32)  # (TS, Dq)
    out_ref[0] = (out + bo_ref[...]).astype(out_ref.dtype)


def _vmem_budget_and_max_rows():
    """Generation-aware VMEM budget / max S-tile.

    v5e / v6e have 128 MiB VMEM per TensorCore -> bigger tiles + ~100 MiB budget.
    v7x has 64 MiB per TensorCore -> conservative 512-row tiles + 48 MiB budget.
    """
    vmem_bytes = 64 * 1024 * 1024  # conservative default if the query fails
    try:
        info = pltpu.get_tpu_info()
        cap = getattr(info, "vmem_capacity_bytes", None)
        if cap:
            vmem_bytes = int(cap)
    except Exception:
        pass
    if vmem_bytes >= 128 * 1024 * 1024:
        return 100 * 1024 * 1024, 1024
    return 48 * 1024 * 1024, 512


def cross_attention_pallas(hidden_states, encoder_hidden_states, params, *,
                           heads, dim_head, mxu_dtype=jnp.bfloat16, block_s=None):
    """Forward pass of CrossAttention with the default CrossAttnProcessor
    (attention_mask=None, Dropout(p=0) identity). Accepts f32 or bf16 activations."""
    # TODO(synk): non-None attention_mask and the AddedKV / Sliced processors are not
    # implemented; only the default CrossAttnProcessor path is covered.
    B, S, Dq = hidden_states.shape
    _, L, Dc = encoder_hidden_states.shape
    inner_dim = heads * dim_head
    scale = float(dim_head) ** -0.5

    vmem_limit, max_rows = _vmem_budget_and_max_rows()
    if block_s is None:
        block_s = _round_up(S, 8) if S <= max_rows else max_rows
    block_s = _round_up(block_s, 8)

    # Pad S up to a multiple of the tile (padded query rows are row-independent and
    # sliced off afterwards) instead of falling back to a VMEM-blowing full-S tile.
    S_pad = _round_up(S, block_s)
    hs = hidden_states
    if S_pad != S:
        hs = jnp.pad(hs, ((0, 0), (0, S_pad - S), (0, 0)))
    num_s = S_pad // block_s

    # nn.Linear weights are (out_features, in_features); pre-transpose to (in, out)
    # slabs so the kernel never transposes, and cast to the MXU dtype once.
    wq_t = params["wq"].T.astype(mxu_dtype)                  # (Dq, inner)
    wo_t = params["wo"].T.astype(mxu_dtype)                  # (inner, Dq)
    bo = params["bo"].reshape(1, Dq).astype(jnp.float32)     # (1, Dq)

    # K/V projections are per-batch work -> hoist out of the kernel so they run exactly
    # once (not once per S-tile); pass them in as bf16 and drop wk/wv from in_specs.
    k_full = jnp.einsum("bld,di->bli", encoder_hidden_states, params["wk"].T,
                        preferred_element_type=jnp.float32).astype(mxu_dtype)
    v_full = jnp.einsum("bld,di->bli", encoder_hidden_states, params["wv"].T,
                        preferred_element_type=jnp.float32).astype(mxu_dtype)

    # Pad encoder length to a multiple of 128 (lane-dense score/softmax/attn@V tiles);
    # the kernel masks the padded key columns to -inf before exp.
    L_pad = max(_round_up(L, 128), 128)
    if L_pad != L:
        k_full = jnp.pad(k_full, ((0, 0), (0, L_pad - L), (0, 0)))
        v_full = jnp.pad(v_full, ((0, 0), (0, L_pad - L), (0, 0)))

    kernel = functools.partial(_cross_attn_kernel, heads=heads, dim_head=dim_head,
                               scale=scale, l_actual=L, l_pad=L_pad, mxu_dtype=mxu_dtype)

    def run(single_buffer_weights):
        def invariant_spec(shape):
            idx = lambda b, st: (0,) * len(shape)
            if single_buffer_weights:
                # Grid-invariant slabs: single-buffer them (no pipelining overlap is
                # lost since their index_map is constant) to halve their VMEM use.
                return pl.BlockSpec(shape, idx, pipeline_mode=pl.Buffered(1))
            return pl.BlockSpec(shape, idx)

        return pl.pallas_call(
            kernel,
            out_shape=jax.ShapeDtypeStruct((B, S_pad, Dq), hidden_states.dtype),
            grid_spec=pltpu.PrefetchScalarGridSpec(
                num_scalar_prefetch=0,
                grid=(B, num_s),
                in_specs=[
                    pl.BlockSpec((1, block_s, Dq), lambda b, st: (b, st, 0)),      # hidden_states tile
                    pl.BlockSpec((1, L_pad, inner_dim), lambda b, st: (b, 0, 0)),  # K (precomputed)
                    pl.BlockSpec((1, L_pad, inner_dim), lambda b, st: (b, 0, 0)),  # V (precomputed)
                    invariant_spec((Dq, inner_dim)),                               # to_q weight (in, out)
                    invariant_spec((inner_dim, Dq)),                               # to_out weight (in, out)
                    invariant_spec((1, Dq)),                                       # to_out bias
                ],
                out_specs=pl.BlockSpec((1, block_s, Dq), lambda b, st: (b, st, 0)),
                scratch_shapes=[pltpu.VMEM((block_s, inner_dim), jnp.float32)],
            ),
            compiler_params=pltpu.CompilerParams(
                # No cross-step reduction: both B and the S-tile axes are parallel, so
                # megacore / dual-TC chips (v7x) always have a shardable axis.
                dimension_semantics=("parallel", "parallel"),
                vmem_limit_bytes=vmem_limit,
            ),
        )(hs, k_full, v_full, wq_t, wo_t, bo)

    try:
        out = run(single_buffer_weights=True)
    except Exception:
        # pipeline_mode=pl.Buffered(1) unsupported on this JAX/Mosaic version ->
        # fall back to default double buffering (identical results).
        out = run(single_buffer_weights=False)

    if S_pad != S:
        out = out[:, :S, :]
    return out


def cross_attention_ref(hidden_states, encoder_hidden_states, params, *, heads, dim_head):
    """Pure-JAX reference reproducing the PyTorch CrossAttnProcessor semantics (f32)."""
    scale = float(dim_head) ** -0.5

    def head_to_batch(t):
        b, s, d = t.shape
        return t.reshape(b, s, heads, d // heads).transpose(0, 2, 1, 3).reshape(b * heads, s, d // heads)

    def batch_to_head(t):
        bh, s, d = t.shape
        return t.reshape(bh // heads, heads, s, d).transpose(0, 2, 1, 3).reshape(bh // heads, s, d * heads)

    q = hidden_states @ params["wq"].T
    k = encoder_hidden_states @ params["wk"].T
    v = encoder_hidden_states @ params["wv"].T
    q, k, v = head_to_batch(q), head_to_batch(k), head_to_batch(v)
    scores = scale * jnp.einsum("bsd,btd->bst", q, k)
    probs = jax.nn.softmax(scores, axis=-1)
    out = jnp.einsum("bst,btd->bsd", probs, v)
    out = batch_to_head(out)
    out = out @ params["wo"].T + params["bo"]
    return out


if __name__ == "__main__":
    # Small, module-consistent shapes.
    B, S, L = 2, 8, 8
    heads, dim_head = 2, 16
    query_dim = 32
    cross_attention_dim = 24
    inner_dim = heads * dim_head

    key = jax.random.PRNGKey(0)
    k1, k2, k3, k4, k5, k6, k7 = jax.random.split(key, 7)

    hidden_states = jax.random.normal(k1, (B, S, query_dim), jnp.float32)
    encoder_hidden_states = jax.random.normal(k2, (B, L, cross_attention_dim), jnp.float32)

    params = {
        # nn.Linear layout: (out_features, in_features); to_q/to_k/to_v have bias=False
        "wq": 0.1 * jax.random.normal(k3, (inner_dim, query_dim), jnp.float32),
        "wk": 0.1 * jax.random.normal(k4, (inner_dim, cross_attention_dim), jnp.float32),
        "wv": 0.1 * jax.random.normal(k5, (inner_dim, cross_attention_dim), jnp.float32),
        "wo": 0.1 * jax.random.normal(k6, (query_dim, inner_dim), jnp.float32),
        "bo": 0.1 * jax.random.normal(k7, (query_dim,), jnp.float32),
    }

    out = cross_attention_pallas(hidden_states, encoder_hidden_states, params,
                                 heads=heads, dim_head=dim_head)
    out = jax.block_until_ready(out)

    ref = cross_attention_ref(hidden_states, encoder_hidden_states, params,
                              heads=heads, dim_head=dim_head)
    assert out.shape == (B, S, query_dim)
    # bf16 MXU operands + approx reciprocal -> compare at a bf16-appropriate tolerance.
    assert jnp.allclose(out, ref, atol=2e-2, rtol=2e-2), "mismatch vs reference"

    print("KERNEL_OK")
</pallas_src>

<mosaic_0001>
module attributes {stable_mosaic.version = 11 : i64} {
  func.func @_cross_attn_kernel(%arg0: i32, %arg1: i32, %arg2: memref<1x8x32xf32, #tpu.memory_space<vmem>>, %arg3: memref<1x128x32xbf16, #tpu.memory_space<vmem>>, %arg4: memref<1x128x32xbf16, #tpu.memory_space<vmem>>, %arg5: memref<32x32xbf16, #tpu.memory_space<vmem>>, %arg6: memref<32x32xbf16, #tpu.memory_space<vmem>>, %arg7: memref<1x32xf32, #tpu.memory_space<vmem>>, %arg8: memref<1x8x32xf32, #tpu.memory_space<vmem>>, %arg9: memref<8x32xf32, #tpu.memory_space<vmem>>) attributes {dimension_semantics = [#tpu.dimension_semantics<parallel>, #tpu.dimension_semantics<parallel>], iteration_bounds = array<i64: 2, 1>, scalar_prefetch = 0 : i64, scratch_operands = 1 : i64, tpu.core_type = #tpu.core_type<tc>, window_params = [{transform_indices = @transform_0, window_bounds = array<i64: 1, 8, 32>}, {transform_indices = @transform_1, window_bounds = array<i64: 1, 128, 32>}, {transform_indices = @transform_2, window_bounds = array<i64: 1, 128, 32>}, {pipeline_mode = #tpu.pipeline_mode<synchronous>, transform_indices = @transform_3, window_bounds = array<i64: 32, 32>}, {pipeline_mode = #tpu.pipeline_mode<synchronous>, transform_indices = @transform_4, window_bounds = array<i64: 32, 32>}, {pipeline_mode = #tpu.pipeline_mode<synchronous>, transform_indices = @transform_5, window_bounds = array<i64: 1, 32>}, {transform_indices = @transform_6, window_bounds = array<i64: 1, 8, 32>}]} {
    %c0 = arith.constant 0 : index
    %c0_0 = arith.constant 0 : index
    %c0_1 = arith.constant 0 : index
    %0 = vector.load %arg2[%c0, %c0_0, %c0_1] : memref<1x8x32xf32, #tpu.memory_space<vmem>>, vector<1x8x32xf32>
    %1 = vector.shape_cast %0 : vector<1x8x32xf32> to vector<8x32xf32>
    %2 = arith.truncf %1 : vector<8x32xf32> to vector<8x32xbf16>
    %c0_2 = arith.constant 0 : index
    %c0_3 = arith.constant 0 : index
    %3 = vector.load %arg5[%c0_2, %c0_3] : memref<32x32xbf16, #tpu.memory_space<vmem>>, vector<32x32xbf16>
    %cst = arith.constant dense<0.000000e+00> : vector<8x32xf32>
    %4 = tpu.matmul %2, %3, %cst {dimension_numbers = #tpu.dot_dimension_numbers<[1], [0], [0], [1], [0, 0, 1, 1], [], []>} : vector<8x32xbf16>, vector<32x32xbf16>, vector<8x32xf32> -> vector<8x32xf32>
    %cst_4 = arith.constant 2.500000e-01 : f32
    %5 = vector.broadcast %cst_4 : f32 to vector<8x32xf32>
    %6 = arith.mulf %4, %5 : vector<8x32xf32>
    %7 = arith.truncf %6 : vector<8x32xf32> to vector<8x32xbf16>
    %c0_5 = arith.constant 0 : index
    %c0_6 = arith.constant 0 : index
    %c0_7 = arith.constant 0 : index
    %8 = vector.load %arg3[%c0_5, %c0_6, %c0_7] : memref<1x128x32xbf16, #tpu.memory_space<vmem>>, vector<1x128x32xbf16>
    %9 = vector.shape_cast %8 : vector<1x128x32xbf16> to vector<128x32xbf16>
    %c0_8 = arith.constant 0 : index
    %c0_9 = arith.constant 0 : index
    %c0_10 = arith.constant 0 : index
    %10 = vector.load %arg4[%c0_8, %c0_9, %c0_10] : memref<1x128x32xbf16, #tpu.memory_space<vmem>>, vector<1x128x32xbf16>
    %11 = vector.shape_cast %10 : vector<1x128x32xbf16> to vector<128x32xbf16>
    %12 = vector.extract_strided_slice %7 {offsets = [0, 0], sizes = [8, 16], strides = [1, 1]} : vector<8x32xbf16> to vector<8x16xbf16>
    %13 = vector.extract_strided_slice %9 {offsets = [0, 0], sizes = [128, 16], strides = [1, 1]} : vector<128x32xbf16> to vector<128x16xbf16>
    %cst_11 = arith.constant dense<0.000000e+00> : vector<8x128xf32>
    %14 = tpu.matmul %12, %13, %cst_11 {dimension_numbers = #tpu.dot_dimension_numbers<[1], [1], [0], [0], [0, 0, 1, 0], [], []>} : vector<8x16xbf16>, vector<128x16xbf16>, vector<8x128xf32> -> vector<8x128xf32>
    %15 = tpu.iota {dimensions = array<i32: 1>} : vector<8x128xi32>
    %c8_i32 = arith.constant 8 : i32
    %16 = vector.broadcast %c8_i32 : i32 to vector<8x128xi32>
    %17 = arith.cmpi slt, %15, %16 : vector<8x128xi32>
    %cst_12 = arith.constant -1.000000e+30 : f32
    %18 = vector.broadcast %cst_12 : f32 to vector<8x128xf32>
    %19 = arith.select %17, %14, %18 : vector<8x128xi1>, vector<8x128xf32>
    %cst_13 = arith.constant dense<0xFF800000> : vector<8xf32>
    %20 = vector.multi_reduction <maximumf>, %19, %cst_13 [1] : vector<8x128xf32> to vector<8xf32>
    %21 = vector.shape_cast %20 : vector<8xf32> to vector<8x1xf32>
    %22 = vector.broadcast %21 : vector<8x1xf32> to vector<8x128xf32>
    %23 = arith.subf %19, %22 : vector<8x128xf32>
    %24 = math.exp %23 : vector<8x128xf32>
    %cst_14 = arith.constant dense<0.000000e+00> : vector<8xf32>
    %25 = vector.multi_reduction <add>, %24, %cst_14 [1] : vector<8x128xf32> to vector<8xf32>
    %26 = vector.shape_cast %25 : vector<8xf32> to vector<8x1xf32>
    %27 = tpu.reciprocal %26 {approx = true} : vector<8x1xf32> -> vector<8x1xf32>
    %28 = vector.broadcast %27 : vector<8x1xf32> to vector<8x128xf32>
    %29 = arith.mulf %24, %28 : vector<8x128xf32>
    %30 = arith.truncf %29 : vector<8x128xf32> to vector<8x128xbf16>
    %31 = vector.extract_strided_slice %11 {offsets = [0, 0], sizes = [128, 16], strides = [1, 1]} : vector<128x32xbf16> to vector<128x16xbf16>
    %cst_15 = arith.constant dense<0.000000e+00> : vector<8x16xf32>
    %32 = tpu.matmul %30, %31, %cst_15 {dimension_numbers = #tpu.dot_dimension_numbers<[1], [0], [0], [1], [0, 0, 1, 1], [], []>} : vector<8x128xbf16>, vector<128x16xbf16>, vector<8x16xf32> -> vector<8x16xf32>
    %c0_16 = arith.constant 0 : index
    %c0_17 = arith.constant 0 : index
    %33 = vector.load %arg9[%c0_16, %c0_17] : memref<8x32xf32, #tpu.memory_space<vmem>>, vector<8x16xf32>
    tpu.vector_store %arg9[%c0_16, %c0_17], %32 {strides = array<i32>} : memref<8x32xf32, #tpu.memory_space<vmem>>, vector<8x16xf32>,
    %34 = vector.extract_strided_slice %7 {offsets = [0, 16], sizes = [8, 16], strides = [1, 1]} : vector<8x32xbf16> to vector<8x16xbf16>
    %35 = vector.extract_strided_slice %9 {offsets = [0, 16], sizes = [128, 16], strides = [1, 1]} : vector<128x32xbf16> to vector<128x16xbf16>
    %cst_18 = arith.constant dense<0.000000e+00> : vector<8x128xf32>
    %36 = tpu.matmul %34, %35, %cst_18 {dimension_numbers = #tpu.dot_dimension_numbers<[1], [1], [0], [0], [0, 0, 1, 0], [], []>} : vector<8x16xbf16>, vector<128x16xbf16>, vector<8x128xf32> -> vector<8x128xf32>
    %37 = tpu.iota {dimensions = array<i32: 1>} : vector<8x128xi32>
    %c8_i32_19 = arith.constant 8 : i32
    %38 = vector.broadcast %c8_i32_19 : i32 to vector<8x128xi32>
    %39 = arith.cmpi slt, %37, %38 : vector<8x128xi32>
    %cst_20 = arith.constant -1.000000e+30 : f32
    %40 = vector.broadcast %cst_20 : f32 to vector<8x128xf32>
    %41 = arith.select %39, %36, %40 : vector<8x128xi1>, vector<8x128xf32>
    %cst_21 = arith.constant dense<0xFF800000> : vector<8xf32>
    %42 = vector.multi_reduction <maximumf>, %41, %cst_21 [1] : vector<8x128xf32> to vector<8xf32>
    %43 = vector.shape_cast %42 : vector<8xf32> to vector<8x1xf32>
    %44 = vector.broadcast %43 : vector<8x1xf32> to vector<8x128xf32>
    %45 = arith.subf %41, %44 : vector<8x128xf32>
    %46 = math.exp %45 : vector<8x128xf32>
    %cst_22 = arith.constant dense<0.000000e+00> : vector<8xf32>
    %47 = vector.multi_reduction <add>, %46, %cst_22 [1] : vector<8x128xf32> to vector<8xf32>
    %48 = vector.shape_cast %47 : vector<8xf32> to vector<8x1xf32>
    %49 = tpu.reciprocal %48 {approx = true} : vector<8x1xf32> -> vector<8x1xf32>
    %50 = vector.broadcast %49 : vector<8x1xf32> to vector<8x128xf32>
    %51 = arith.mulf %46, %50 : vector<8x128xf32>
    %52 = arith.truncf %51 : vector<8x128xf32> to vector<8x128xbf16>
    %53 = vector.extract_strided_slice %11 {offsets = [0, 16], sizes = [128, 16], strides = [1, 1]} : vector<128x32xbf16> to vector<128x16xbf16>
    %cst_23 = arith.constant dense<0.000000e+00> : vector<8x16xf32>
    %54 = tpu.matmul %52, %53, %cst_23 {dimension_numbers = #tpu.dot_dimension_numbers<[1], [0], [0], [1], [0, 0, 1, 1], [], []>} : vector<8x128xbf16>, vector<128x16xbf16>, vector<8x16xf32> -> vector<8x16xf32>
    %c0_24 = arith.constant 0 : index
    %c16 = arith.constant 16 : index
    %55 = vector.load %arg9[%c0_24, %c16] : memref<8x32xf32, #tpu.memory_space<vmem>>, vector<8x16xf32>
    tpu.vector_store %arg9[%c0_24, %c16], %54 {strides = array<i32>} : memref<8x32xf32, #tpu.memory_space<vmem>>, vector<8x16xf32>,
    %c0_25 = arith.constant 0 : index
    %c0_26 = arith.constant 0 : index
    %56 = vector.load %arg9[%c0_25, %c0_26] : memref<8x32xf32, #tpu.memory_space<vmem>>, vector<8x32xf32>
    %57 = arith.truncf %56 : vector<8x32xf32> to vector<8x32xbf16>
    %c0_27 = arith.constant 0 : index
    %c0_28 = arith.constant 0 : index
    %58 = vector.load %arg6[%c0_27, %c0_28] : memref<32x32xbf16, #tpu.memory_space<vmem>>, vector<32x32xbf16>
    %cst_29 = arith.constant dense<0.000000e+00> : vector<8x32xf32>
    %59 = tpu.matmul %57, %58, %cst_29 {dimension_numbers = #tpu.dot_dimension_numbers<[1], [0], [0], [1], [0, 0, 1, 1], [], []>} : vector<8x32xbf16>, vector<32x32xbf16>, vector<8x32xf32> -> vector<8x32xf32>
    %c0_30 = arith.constant 0 : index
    %c0_31 = arith.constant 0 : index
    %60 = vector.load %arg7[%c0_30, %c0_31] : memref<1x32xf32, #tpu.memory_space<vmem>>, vector<1x32xf32>
    %61 = vector.broadcast %60 : vector<1x32xf32> to vector<8x32xf32>
    %62 = arith.addf %59, %61 : vector<8x32xf32>
    %c0_32 = arith.constant 0 : index
    %c0_33 = arith.constant 0 : index
    %c0_34 = arith.constant 0 : index
    %63 = vector.load %arg8[%c0_32, %c0_33, %c0_34] : memref<1x8x32xf32, #tpu.memory_space<vmem>>, vector<1x8x32xf32>
    %64 = vector.shape_cast %63 : vector<1x8x32xf32> to vector<8x32xf32>
    %65 = vector.shape_cast %62 : vector<8x32xf32> to vector<1x8x32xf32>
    tpu.vector_store %arg8[%c0_32, %c0_33, %c0_34], %65 {strides = array<i32>} : memref<1x8x32xf32, #tpu.memory_space<vmem>>, vector<1x8x32xf32>,
    return
  }
  func.func @transform_0(%arg0: i32, %arg1: i32) -> (i32, i32, i32) {
    %c0_i32 = arith.constant 0 : i32
    %c0_i32_0 = arith.constant 0 : i32
    return %arg0, %arg1, %c0_i32 : i32, i32, i32
  }
  func.func @transform_1(%arg0: i32, %arg1: i32) -> (i32, i32, i32) {
    %c0_i32 = arith.constant 0 : i32
    %c0_i32_0 = arith.constant 0 : i32
    %c0_i32_1 = arith.constant 0 : i32
    return %arg0, %c0_i32, %c0_i32_0 : i32, i32, i32
  }
  func.func @transform_2(%arg0: i32, %arg1: i32) -> (i32, i32, i32) {
    %c0_i32 = arith.constant 0 : i32
    %c0_i32_0 = arith.constant 0 : i32
    %c0_i32_1 = arith.constant 0 : i32
    return %arg0, %c0_i32, %c0_i32_0 : i32, i32, i32
  }
  func.func @transform_3(%arg0: i32, %arg1: i32) -> (i32, i32) {
    %c0_i32 = arith.constant 0 : i32
    %c0_i32_0 = arith.constant 0 : i32
    %c0_i32_1 = arith.constant 0 : i32
    return %c0_i32, %c0_i32_0 : i32, i32
  }
  func.func @transform_4(%arg0: i32, %arg1: i32) -> (i32, i32) {
    %c0_i32 = arith.constant 0 : i32
    %c0_i32_0 = arith.constant 0 : i32
    %c0_i32_1 = arith.constant 0 : i32
    return %c0_i32, %c0_i32_0 : i32, i32
  }
  func.func @transform_5(%arg0: i32, %arg1: i32) -> (i32, i32) {
    %c0_i32 = arith.constant 0 : i32
    %c0_i32_0 = arith.constant 0 : i32
    %c0_i32_1 = arith.constant 0 : i32
    return %c0_i32, %c0_i32_0 : i32, i32
  }
  func.func @transform_6(%arg0: i32, %arg1: i32) -> (i32, i32, i32) {
    %c0_i32 = arith.constant 0 : i32
    %c0_i32_0 = arith.constant 0 : i32
    return %arg0, %arg1, %c0_i32 : i32, i32, i32
  }
}

module attributes {stable_mosaic.version = 11 : i64} {
  func.func @_cross_attn_kernel(%arg0: i32, %arg1: i32, %arg2: memref<1x8x32xf32, #tpu.memory_space<vmem>>, %arg3: memref<1x128x32xbf16, #tpu.memory_space<vmem>>, %arg4: memref<1x128x32xbf16, #tpu.memory_space<vmem>>, %arg5: memref<32x32xbf16, #tpu.memory_space<vmem>>, %arg6: memref<32x32xbf16, #tpu.memory_space<vmem>>, %arg7: memref<1x32xf32, #tpu.memory_space<vmem>>, %arg8: memref<1x8x32xf32, #tpu.memory_space<vmem>>, %arg9: memref<8x32xf32, #tpu.memory_space<vmem>>) attributes {dimension_semantics = [#tpu.dimension_semantics<parallel>, #tpu.dimension_semantics<parallel>], iteration_bounds = array<i64: 2, 1>, scalar_prefetch = 0 : i64, scratch_operands = 1 : i64, tpu.core_type = #tpu.core_type<tc>, window_params = [{transform_indices = @transform_0, window_bounds = array<i64: 1, 8, 32>}, {transform_indices = @transform_1, window_bounds = array<i64: 1, 128, 32>}, {transform_indices = @transform_2, window_bounds = array<i64: 1, 128, 32>}, {pipeline_mode = #tpu.pipeline_mode<synchronous>, transform_indices = @transform_3, window_bounds = array<i64: 32, 32>}, {pipeline_mode = #tpu.pipeline_mode<synchronous>, transform_indices = @transform_4, window_bounds = array<i64: 32, 32>}, {pipeline_mode = #tpu.pipeline_mode<synchronous>, transform_indices = @transform_5, window_bounds = array<i64: 1, 32>}, {transform_indices = @transform_6, window_bounds = array<i64: 1, 8, 32>}]} {
    %c0 = arith.constant 0 : index
    %c0_0 = arith.constant 0 : index
    %c0_1 = arith.constant 0 : index
    %0 = vector.load %arg2[%c0, %c0_0, %c0_1] : memref<1x8x32xf32, #tpu.memory_space<vmem>>, vector<1x8x32xf32>
    %1 = vector.shape_cast %0 : vector<1x8x32xf32> to vector<8x32xf32>
    %2 = arith.truncf %1 : vector<8x32xf32> to vector<8x32xbf16>
    %c0_2 = arith.constant 0 : index
    %c0_3 = arith.constant 0 : index
    %3 = vector.load %arg5[%c0_2, %c0_3] : memref<32x32xbf16, #tpu.memory_space<vmem>>, vector<32x32xbf16>
    %cst = arith.constant dense<0.000000e+00> : vector<8x32xf32>
    %4 = tpu.matmul %2, %3, %cst {dimension_numbers = #tpu.dot_dimension_numbers<[1], [0], [0], [1], [0, 0, 1, 1], [], []>} : vector<8x32xbf16>, vector<32x32xbf16>, vector<8x32xf32> -> vector<8x32xf32>
    %cst_4 = arith.constant 2.500000e-01 : f32
    %5 = vector.broadcast %cst_4 : f32 to vector<8x32xf32>
    %6 = arith.mulf %4, %5 : vector<8x32xf32>
    %7 = arith.truncf %6 : vector<8x32xf32> to vector<8x32xbf16>
    %c0_5 = arith.constant 0 : index
    %c0_6 = arith.constant 0 : index
    %c0_7 = arith.constant 0 : index
    %8 = vector.load %arg3[%c0_5, %c0_6, %c0_7] : memref<1x128x32xbf16, #tpu.memory_space<vmem>>, vector<1x128x32xbf16>
    %9 = vector.shape_cast %8 : vector<1x128x32xbf16> to vector<128x32xbf16>
    %c0_8 = arith.constant 0 : index
    %c0_9 = arith.constant 0 : index
    %c0_10 = arith.constant 0 : index
    %10 = vector.load %arg4[%c0_8, %c0_9, %c0_10] : memref<1x128x32xbf16, #tpu.memory_space<vmem>>, vector<1x128x32xbf16>
    %11 = vector.shape_cast %10 : vector<1x128x32xbf16> to vector<128x32xbf16>
    %12 = vector.extract_strided_slice %7 {offsets = [0, 0], sizes = [8, 16], strides = [1, 1]} : vector<8x32xbf16> to vector<8x16xbf16>
    %13 = vector.extract_strided_slice %9 {offsets = [0, 0], sizes = [128, 16], strides = [1, 1]} : vector<128x32xbf16> to vector<128x16xbf16>
    %cst_11 = arith.constant dense<0.000000e+00> : vector<8x128xf32>
    %14 = tpu.matmul %12, %13, %cst_11 {dimension_numbers = #tpu.dot_dimension_numbers<[1], [1], [0], [0], [0, 0, 1, 0], [], []>} : vector<8x16xbf16>, vector<128x16xbf16>, vector<8x128xf32> -> vector<8x128xf32>
    %15 = tpu.iota {dimensions = array<i32: 1>} : vector<8x128xi32>
    %c8_i32 = arith.constant 8 : i32
    %16 = vector.broadcast %c8_i32 : i32 to vector<8x128xi32>
    %17 = arith.cmpi slt, %15, %16 : vector<8x128xi32>
    %cst_12 = arith.constant -1.000000e+30 : f32
    %18 = vector.broadcast %cst_12 : f32 to vector<8x128xf32>
    %19 = arith.select %17, %14, %18 : vector<8x128xi1>, vector<8x128xf32>
    %cst_13 = arith.constant dense<0xFF800000> : vector<8xf32>
    %20 = vector.multi_reduction <maximumf>, %19, %cst_13 [1] : vector<8x128xf32> to vector<8xf32>
    %21 = vector.shape_cast %20 : vector<8xf32> to vector<8x1xf32>
    %22 = vector.broadcast %21 : vector<8x1xf32> to vector<8x128xf32>
    %23 = arith.subf %19, %22 : vector<8x128xf32>
    %24 = math.exp %23 : vector<8x128xf32>
    %cst_14 = arith.constant dense<0.000000e+00> : vector<8xf32>
    %25 = vector.multi_reduction <add>, %24, %cst_14 [1] : vector<8x128xf32> to vector<8xf32>
    %26 = vector.shape_cast %25 : vector<8xf32> to vector<8x1xf32>
    %27 = tpu.reciprocal %26 {approx = true} : vector<8x1xf32> -> vector<8x1xf32>
    %28 = vector.broadcast %27 : vector<8x1xf32> to vector<8x128xf32>
    %29 = arith.mulf %24, %28 : vector<8x128xf32>
    %30 = arith.truncf %29 : vector<8x128xf32> to vector<8x128xbf16>
    %31 = vector.extract_strided_slice %11 {offsets = [0, 0], sizes = [128, 16], strides = [1, 1]} : vector<128x32xbf16> to vector<128x16xbf16>
    %cst_15 = arith.constant dense<0.000000e+00> : vector<8x16xf32>
    %32 = tpu.matmul %30, %31, %cst_15 {dimension_numbers = #tpu.dot_dimension_numbers<[1], [0], [0], [1], [0, 0, 1, 1], [], []>} : vector<8x128xbf16>, vector<128x16xbf16>, vector<8x16xf32> -> vector<8x16xf32>
    %c0_16 = arith.constant 0 : index
    %c0_17 = arith.constant 0 : index
    %33 = vector.load %arg9[%c0_16, %c0_17] : memref<8x32xf32, #tpu.memory_space<vmem>>, vector<8x16xf32>
    tpu.vector_store %arg9[%c0_16, %c0_17], %32 {strides = array<i32>} : memref<8x32xf32, #tpu.memory_space<vmem>>, vector<8x16xf32>,
    %34 = vector.extract_strided_slice %7 {offsets = [0, 16], sizes = [8, 16], strides = [1, 1]} : vector<8x32xbf16> to vector<8x16xbf16>
    %35 = vector.extract_strided_slice %9 {offsets = [0, 16], sizes = [128, 16], strides = [1, 1]} : vector<128x32xbf16> to vector<128x16xbf16>
    %cst_18 = arith.constant dense<0.000000e+00> : vector<8x128xf32>
    %36 = tpu.matmul %34, %35, %cst_18 {dimension_numbers = #tpu.dot_dimension_numbers<[1], [1], [0], [0], [0, 0, 1, 0], [], []>} : vector<8x16xbf16>, vector<128x16xbf16>, vector<8x128xf32> -> vector<8x128xf32>
    %37 = tpu.iota {dimensions = array<i32: 1>} : vector<8x128xi32>
    %c8_i32_19 = arith.constant 8 : i32
    %38 = vector.broadcast %c8_i32_19 : i32 to vector<8x128xi32>
    %39 = arith.cmpi slt, %37, %38 : vector<8x128xi32>
    %cst_20 = arith.constant -1.000000e+30 : f32
    %40 = vector.broadcast %cst_20 : f32 to vector<8x128xf32>
    %41 = arith.select %39, %36, %40 : vector<8x128xi1>, vector<8x128xf32>
    %cst_21 = arith.constant dense<0xFF800000> : vector<8xf32>
    %42 = vector.multi_reduction <maximumf>, %41, %cst_21 [1] : vector<8x128xf32> to vector<8xf32>
    %43 = vector.shape_cast %42 : vector<8xf32> to vector<8x1xf32>
    %44 = vector.broadcast %43 : vector<8x1xf32> to vector<8x128xf32>
    %45 = arith.subf %41, %44 : vector<8x128xf32>
    %46 = math.exp %45 : vector<8x128xf32>
    %cst_22 = arith.constant dense<0.000000e+00> : vector<8xf32>
    %47 = vector.multi_reduction <add>, %46, %cst_22 [1] : vector<8x128xf32> to vector<8xf32>
    %48 = vector.shape_cast %47 : vector<8xf32> to vector<8x1xf32>
    %49 = tpu.reciprocal %48 {approx = true} : vector<8x1xf32> -> vector<8x1xf32>
    %50 = vector.broadcast %49 : vector<8x1xf32> to vector<8x128xf32>
    %51 = arith.mulf %46, %50 : vector<8x128xf32>
    %52 = arith.truncf %51 : vector<8x128xf32> to vector<8x128xbf16>
    %53 = vector.extract_strided_slice %11 {offsets = [0, 16], sizes = [128, 16], strides = [1, 1]} : vector<128x32xbf16> to vector<128x16xbf16>
    %cst_23 = arith.constant dense<0.000000e+00> : vector<8x16xf32>
    %54 = tpu.matmul %52, %53, %cst_23 {dimension_numbers = #tpu.dot_dimension_numbers<[1], [0], [0], [1], [0, 0, 1, 1], [], []>} : vector<8x128xbf16>, vector<128x16xbf16>, vector<8x16xf32> -> vector<8x16xf32>
    %c0_24 = arith.constant 0 : index
    %c16 = arith.constant 16 : index
    %55 = vector.load %arg9[%c0_24, %c16] : memref<8x32xf32, #tpu.memory_space<vmem>>, vector<8x16xf32>
    tpu.vector_store %arg9[%c0_24, %c16], %54 {strides = array<i32>} : memref<8x32xf32, #tpu.memory_space<vmem>>, vector<8x16xf32>,
    %c0_25 = arith.constant 0 : index
    %c0_26 = arith.constant 0 : index
    %56 = vector.load %arg9[%c0_25, %c0_26] : memref<8x32xf32, #tpu.memory_space<vmem>>, vector<8x32xf32>
    %57 = arith.truncf %56 : vector<8x32xf32> to vector<8x32xbf16>
    %c0_27 = arith.constant 0 : index
    %c0_28 = arith.constant 0 : index
    %58 = vector.load %arg6[%c0_27, %c0_28] : memref<32x32xbf16, #tpu.memory_space<vmem>>, vector<32x32xbf16>
    %cst_29 = arith.constant dense<0.000000e+00> : vector<8x32xf32>
    %59 = tpu.matmul %57, %58, %cst_29 {dimension_numbers = #tpu.dot_dimension_numbers<[1], [0], [0], [1], [0, 0, 1, 1], [], []>} : vector<8x32xbf16>, vector<32x32xbf16>, vector<8x32xf32> -> vector<8x32xf32>
    %c0_30 = arith.constant 0 : index
    %c0_31 = arith.constant 0 : index
    %60 = vector.load %arg7[%c0_30, %c0_31] : memref<1x32xf32, #tpu.memory_space<vmem>>, vector<1x32xf32>
    %61 = vector.broadcast %60 : vector<1x32xf32> to vector<8x32xf32>
    %62 = arith.addf %59, %61 : vector<8x32xf32>
    %c0_32 = arith.constant 0 : index
    %c0_33 = arith.constant 0 : index
    %c0_34 = arith.constant 0 : index
    %63 = vector.load %arg8[%c0_32, %c0_33, %c0_34] : memref<1x8x32xf32, #tpu.memory_space<vmem>>, vector<1x8x32xf32>
    %64 = vector.shape_cast %63 : vector<1x8x32xf32> to vector<8x32xf32>
    %65 = vector.shape_cast %62 : vector<8x32xf32> to vector<1x8x32xf32>
    tpu.vector_store %arg8[%c0_32, %c0_33, %c0_34], %65 {strides = array<i32>} : memref<1x8x32xf32, #tpu.memory_space<vmem>>, vector<1x8x32xf32>,
    return
  }
  func.func @transform_0(%arg0: i32, %arg1: i32) -> (i32, i32, i32) {
    %c0_i32 = arith.constant 0 : i32
    %c0_i32_0 = arith.constant 0 : i32
    return %arg0, %arg1, %c0_i32 : i32, i32, i32
  }
  func.func @transform_1(%arg0: i32, %arg1: i32) -> (i32, i32, i32) {
    %c0_i32 = arith.constant 0 : i32
    %c0_i32_0 = arith.constant 0 : i32
    %c0_i32_1 = arith.constant 0 : i32
    return %arg0, %c0_i32, %c0_i32_0 : i32, i32, i32
  }
  func.func @transform_2(%arg0: i32, %arg1: i32) -> (i32, i32, i32) {
    %c0_i32 = arith.constant 0 : i32
    %c0_i32_0 = arith.constant 0 : i32
    %c0_i32_1 = arith.constant 0 : i32
    return %arg0, %c0_i32, %c0_i32_0 : i32, i32, i32
  }
  func.func @transform_3(%arg0: i32, %arg1: i32) -> (i32, i32) {
    %c0_i32 = arith.constant 0 : i32
    %c0_i32_0 = arith.constant 0 : i32
    %c0_i32_1 = arith.constant 0 : i32
    return %c0_i32, %c0_i32_0 : i32, i32
  }
  func.func @transform_4(%arg0: i32, %arg1: i32) -> (i32, i32) {
    %c0_i32 = arith.constant 0 : i32
    %c0_i32_0 = arith.constant 0 : i32
    %c0_i32_1 = arith.constant 0 : i32
    return %c0_i32, %c0_i32_0 : i32, i32
  }
  func.func @transform_5(%arg0: i32, %arg1: i32) -> (i32, i32) {
    %c0_i32 = arith.constant 0 : i32
    %c0_i32_0 = arith.constant 0 : i32
    %c0_i32_1 = arith.constant 0 : i32
    return %c0_i32, %c0_i32_0 : i32, i32
  }
  func.func @transform_6(%arg0: i32, %arg1: i32) -> (i32, i32, i32) {
    %c0_i32 = arith.constant 0 : i32
    %c0_i32_0 = arith.constant 0 : i32
    return %arg0, %arg1, %c0_i32 : i32, i32, i32
  }
}

</mosaic_0001>

<llo_original>
// kernel: tpu_custom_call.1
$region0: #{tpu_custom_call.1}
  #allocation0 [shape = 'u32[]', space=smem, size = 0x4, offset = 0x4, fixed_abs, tag = 'smem constant byte address 0x4 - core index']
  #allocation1 [shape = 'u32[144,128]{1,0:T(1,128)}', space=vmem, size = 0x12000, scoped, tag = 'internal scratch']
  #allocation2 [shape = 'f32[8,32]{1,0:T(8,128)}', space=vmem, size = 0x1000, scoped, tag = 'scratch operand']
  %s0 = inlined_call_operand.vmem [shape: f32[2,8,32], index: 0, kind: input, shape index: {}]
  %s1 = inlined_call_operand.vmem [shape: bf16[2,128,32], index: 1, kind: input, shape index: {}]
  %s2 = inlined_call_operand.vmem [shape: bf16[2,128,32], index: 2, kind: input, shape index: {}]
  %s3 = inlined_call_operand.vmem [shape: bf16[32,32], index: 3, kind: input, shape index: {}]
  %s4 = inlined_call_operand.vmem [shape: bf16[32,32], index: 4, kind: input, shape index: {}]
  %s5 = inlined_call_operand.vmem [shape: f32[1,32], index: 5, kind: input, shape index: {}]
  %s6 = inlined_call_operand.hbm [shape: f32[2,8,32], index: 6, kind: output, shape index: {}]
  %s7 = sld [smem:[#allocation0]]
  $region57: #{tpu_custom_call.1} parent=0
    _
  %s9 = ssub.s32 1, %s7
  %s10 = scalar_select 0, %s9, %s7
  $region1: #{tpu_custom_call.1} parent=0
    #allocation3 [shape = 'u8[8192]{0}', space=vmem, size = 0x2000, scoped, tag = 'output window, operand 0']
    #allocation4 [shape = 's32[2]{0}', space=sflag, size = 0x8, scoped, tag = 'scoped memory for tpu_custom_call.1']
    %11 = vsyncpa [#allocation4], 0
    %s12 = scalar_lea.sflag [#allocation4], 1
    %13 = vsyncpa %s12, 0
    loop: start=0, step=1, limit=4
    $region2: #{tpu_custom_call.1} parent=1 // loop_pre_header
      _
    $region3: #{tpu_custom_call.1} parent=1 // loop_header
      %s15 = sphi 0, %s19
      %p16 = scmp.ge.s32.totalorder %s15, 4
      %s22 = sphi 0, %s34
      %s23 = sphi 0, %s30
      %s24 = sphi 0, %s22
      %s25 = sphi 0, %s23
      %s26 = sphi 0, %s24
      %s27 = sphi 0, %s25
      %s39 = sphi 0, %s41
      %s42 = sphi 0, %s39
      %s43 = sphi 0, %s42
      %s59 = sphi 0, %s43
      %s65 = sphi 0, %s67
      %s68 = sphi 0, %s65
      %s69 = sphi 0, %s68
      %s85 = sphi 0, %s69
      %s91 = sphi 0, %s93
      %s94 = sphi 0, %s91
      %s95 = sphi 0, %s94
      %s111 = sphi 0, %s95
      %s115 = sphi 0, %s115
      %s117 = sphi 0, %s115
      %s118 = sphi 0, %s117
      %s132 = sphi 0, %s118
      %s136 = sphi 0, %s136
      %s138 = sphi 0, %s136
      %s139 = sphi 0, %s138
      %s153 = sphi 0, %s139
      %s157 = sphi 0, %s157
      %s159 = sphi 0, %s157
      %s160 = sphi 0, %s159
      %s174 = sphi 0, %s160
      %s182 = sphi 0, %s184
      %s185 = sphi 0, %s182
      %s186 = sphi 0, %s185
      %s202 = sphi 0, %s186
    $region4: #{tpu_custom_call.1} parent=1 // loop_header_branch
      %18 = sbr.rel (%p16) target = $region8
    $region5: #{tpu_custom_call.1} parent=1 // loop_body
      %s20 = ssub.s32 %s15, 1
      %s21 = ssub.s32 %s15, 2
      %s28 = sadd.s32 1, %s23
      %p29 = scmp.ge.s32.totalorder %s28, 1
      %s30 = scalar_select %p29, 0, %s28
      %s31 = sadd.s32 1, %s22
      %s32 = scalar_select %p29, %s31, %s22
      %p33 = scmp.ge.s32.totalorder %s32, 2
      %s34 = scalar_select %p33, 0, %s32
      %s35 = ssub.s32 %s22, %s34
      %s36 = ssub.s32 %s23, %s30
      %s37 = sor.u32 %s35, %s36
      %p38 = scmp.eq.s32.totalorder %s37, 0
      %s40 = sadd.s32 %s39, 1
      %s41 = scalar_select %p38, %s39, %s40
      %p44 = pneg %p38
      %p45 = scmp.eq.s32.totalorder %s15, 1
      %p46 = por %p44, %p45
      %p47 = scmp.ne.s32.totalorder %s39, %s42
      %p48 = scmp.eq.s32.totalorder %s15, 0
      %p49 = por %p47, %p48
      %p50 = scmp.ne.s32.totalorder %s39, %s42
      %p51 = scmp.eq.s32.totalorder %s20, 1
      %p52 = por %p50, %p51
      %p53 = scmp.ne.s32.totalorder %s42, %s43
      %p54 = scmp.eq.s32.totalorder %s20, 0
      %p55 = por %p53, %p54
      %p56 = scmp.ne.s32.totalorder %s42, %s43
      %p57 = scmp.eq.s32.totalorder %s21, 1
      %p58 = por %p56, %p57
      %p60 = scmp.ne.s32.totalorder %s43, %s59
      %p61 = scmp.eq.s32.totalorder %s21, 0
      %p62 = por %p60, %p61
      %s63 = ssub.s32 %s22, %s34
      %p64 = scmp.eq.s32.totalorder %s63, 0
      %s66 = sadd.s32 %s65, 1
      %s67 = scalar_select %p64, %s65, %s66
      %p70 = pneg %p64
      %p71 = scmp.eq.s32.totalorder %s15, 1
      %p72 = por %p70, %p71
      %p73 = scmp.ne.s32.totalorder %s65, %s68
      %p74 = scmp.eq.s32.totalorder %s15, 0
      %p75 = por %p73, %p74
      %p76 = scmp.ne.s32.totalorder %s65, %s68
      %p77 = scmp.eq.s32.totalorder %s20, 1
      %p78 = por %p76, %p77
      %p79 = scmp.ne.s32.totalorder %s68, %s69
      %p80 = scmp.eq.s32.totalorder %s20, 0
      %p81 = por %p79, %p80
      %p82 = scmp.ne.s32.totalorder %s68, %s69
      %p83 = scmp.eq.s32.totalorder %s21, 1
      %p84 = por %p82, %p83
      %p86 = scmp.ne.s32.totalorder %s69, %s85
      %p87 = scmp.eq.s32.totalorder %s21, 0
      %p88 = por %p86, %p87
      %s89 = ssub.s32 %s22, %s34
      %p90 = scmp.eq.s32.totalorder %s89, 0
      %s92 = sadd.s32 %s91, 1
      %s93 = scalar_select %p90, %s91, %s92
      %p96 = pneg %p90
      %p97 = scmp.eq.s32.totalorder %s15, 1
      %p98 = por %p96, %p97
      %p99 = scmp.ne.s32.totalorder %s91, %s94
      %p100 = scmp.eq.s32.totalorder %s15, 0
      %p101 = por %p99, %p100
      %p102 = scmp.ne.s32.totalorder %s91, %s94
      %p103 = scmp.eq.s32.totalorder %s20, 1
      %p104 = por %p102, %p103
      %p105 = scmp.ne.s32.totalorder %s94, %s95
      %p106 = scmp.eq.s32.totalorder %s20, 0
      %p107 = por %p105, %p106
      %p108 = scmp.ne.s32.totalorder %s94, %s95
      %p109 = scmp.eq.s32.totalorder %s21, 1
      %p110 = por %p108, %p109
      %p112 = scmp.ne.s32.totalorder %s95, %s111
      %p113 = scmp.eq.s32.totalorder %s21, 0
      %p114 = por %p112, %p113
      %s116 = sadd.s32 %s115, 1
      %p119 = scmp.eq.s32.totalorder %s15, 1
      %p120 = scmp.ne.s32.totalorder %s115, %s117
      %p121 = scmp.eq.s32.totalorder %s15, 0
      %p122 = por %p120, %p121
      %p123 = scmp.ne.s32.totalorder %s115, %s117
      %p124 = scmp.eq.s32.totalorder %s20, 1
      %p125 = por %p123, %p124
      %p126 = scmp.ne.s32.totalorder %s117, %s118
      %p127 = scmp.eq.s32.totalorder %s20, 0
      %p128 = por %p126, %p127
      %p129 = scmp.ne.s32.totalorder %s117, %s118
      %p130 = scmp.eq.s32.totalorder %s21, 1
      %p131 = por %p129, %p130
      %p133 = scmp.ne.s32.totalorder %s118, %s132
      %p134 = scmp.eq.s32.totalorder %s21, 0
      %p135 = por %p133, %p134
      %s137 = sadd.s32 %s136, 1
      %p140 = scmp.eq.s32.totalorder %s15, 1
      %p141 = scmp.ne.s32.totalorder %s136, %s138
      %p142 = scmp.eq.s32.totalorder %s15, 0
      %p143 = por %p141, %p142
      %p144 = scmp.ne.s32.totalorder %s136, %s138
      %p145 = scmp.eq.s32.totalorder %s20, 1
      %p146 = por %p144, %p145
      %p147 = scmp.ne.s32.totalorder %s138, %s139
      %p148 = scmp.eq.s32.totalorder %s20, 0
      %p149 = por %p147, %p148
      %p150 = scmp.ne.s32.totalorder %s138, %s139
      %p151 = scmp.eq.s32.totalorder %s21, 1
      %p152 = por %p150, %p151
      %p154 = scmp.ne.s32.totalorder %s139, %s153
      %p155 = scmp.eq.s32.totalorder %s21, 0
      %p156 = por %p154, %p155
      %s158 = sadd.s32 %s157, 1
      %p161 = scmp.eq.s32.totalorder %s15, 1
      %p162 = scmp.ne.s32.totalorder %s157, %s159
      %p163 = scmp.eq.s32.totalorder %s15, 0
      %p164 = por %p162, %p163
      %p165 = scmp.ne.s32.totalorder %s157, %s159
      %p166 = scmp.eq.s32.totalorder %s20, 1
      %p167 = por %p165, %p166
      %p168 = scmp.ne.s32.totalorder %s159, %s160
      %p169 = scmp.eq.s32.totalorder %s20, 0
      %p170 = por %p168, %p169
      %p171 = scmp.ne.s32.totalorder %s159, %s160
      %p172 = scmp.eq.s32.totalorder %s21, 1
      %p173 = por %p171, %p172
      %p175 = scmp.ne.s32.totalorder %s160, %s174
      %p176 = scmp.eq.s32.totalorder %s21, 0
      %p177 = por %p175, %p176
      %s178 = ssub.s32 %s22, %s34
      %s179 = ssub.s32 %s23, %s30
      %s180 = sor.u32 %s178, %s179
      %p181 = scmp.eq.s32.totalorder %s180, 0
      %s183 = sadd.s32 %s182, 1
      %s184 = scalar_select %p181, %s182, %s183
      %p187 = pneg %p181
      %p188 = scmp.eq.s32.totalorder %s15, 1
      %p189 = por %p187, %p188
      %p190 = scmp.ne.s32.totalorder %s182, %s185
      %p191 = scmp.eq.s32.totalorder %s15, 0
      %p192 = por %p190, %p191
      %p193 = scmp.ne.s32.totalorder %s182, %s185
      %p194 = scmp.eq.s32.totalorder %s20, 1
      %p195 = por %p193, %p194
      %p196 = scmp.ne.s32.totalorder %s185, %s186
      %p197 = scmp.eq.s32.totalorder %s20, 0
      %p198 = por %p196, %p197
      %p199 = scmp.ne.s32.totalorder %s185, %s186
      %p200 = scmp.eq.s32.totalorder %s21, 1
      %p201 = por %p199, %p200
      %p203 = scmp.ne.s32.totalorder %s186, %s202
      %p204 = scmp.eq.s32.totalorder %s21, 0
      %p205 = por %p203, %p204
      %p206 = scmp.le.s32.totalorder 1, %s15
      %p207 = scmp.lt.s32.totalorder %s15, 3
      %p208 = pnand %p206, %p207
      %p209 = pneg %p208
      // Predicated region
      $region9: #{tpu_custom_call.1} parent=5 // pred_check
        _
      $region10: #{tpu_custom_call.1} parent=5 // pred_check_branch
        %211 = sbr.rel (%p208) target = $region12
      $region11: #{tpu_custom_call.1} parent=5 // pred_region
        %s212 = ssub.s32 %s15, 1
        // Predicated region
        $region13: #{tpu_custom_call.1} parent=11 // pred_check
          %p213 = pneg %p128
        $region14: #{tpu_custom_call.1} parent=11 // pred_check_branch
          %215 = sbr.rel (%p213) target = $region16
        $region15: #{tpu_custom_call.1} parent=11 // pred_region
          _
        $region16: #{tpu_custom_call.1} parent=11 // pred_fallthru
          _
        // Predicated region
        $region17: #{tpu_custom_call.1} parent=11 // pred_check
          %p216 = pneg %p149
        $region18: #{tpu_custom_call.1} parent=11 // pred_check_branch
          %218 = sbr.rel (%p216) target = $region20
        $region19: #{tpu_custom_call.1} parent=11 // pred_region
          _
        $region20: #{tpu_custom_call.1} parent=11 // pred_fallthru
          _
        // Predicated region
        $region21: #{tpu_custom_call.1} parent=11 // pred_check
          %p219 = pneg %p170
        $region22: #{tpu_custom_call.1} parent=11 // pred_check_branch
          %221 = sbr.rel (%p219) target = $region24
        $region23: #{tpu_custom_call.1} parent=11 // pred_region
          _
        $region24: #{tpu_custom_call.1} parent=11 // pred_fallthru
          _
      $region12: #{tpu_custom_call.1} parent=5 // pred_fallthru
        _
      %p222 = scmp.lt.s32.totalorder %s15, 2
      // Predicated region
      $region25: #{tpu_custom_call.1} parent=5 // pred_check
        %p223 = pneg %p222
      $region26: #{tpu_custom_call.1} parent=5 // pred_check_branch
        %225 = sbr.rel (%p223) target = $region28
      $region27: #{tpu_custom_call.1} parent=5 // pred_region
        // Predicated region
        $region29: #{tpu_custom_call.1} parent=27 // pred_check
          %p226 = pneg %p49
        $region30: #{tpu_custom_call.1} parent=27 // pred_check_branch
          %228 = sbr.rel (%p226) target = $region32
        $region31: #{tpu_custom_call.1} parent=27 // pred_region
          %p229 = scmp.lt.s32.totalorder %s22, 1
          %s230 = scalar_select %p229, %s22, 1
          %p231 = scmp.lt.s32.totalorder %s23, 0
          %s232 = scalar_select %p231, %s23, 0
          %s233 = sadd.s32 %s232, %s230
          %s234 = smul.addr %s233, 8
          %s235 = scalar_lea.vmem %s0, %s234
        $region32: #{tpu_custom_call.1} parent=27 // pred_fallthru
          _
        // Predicated region
        $region33: #{tpu_custom_call.1} parent=27 // pred_check
          %p236 = pneg %p75
        $region34: #{tpu_custom_call.1} parent=27 // pred_check_branch
          %238 = sbr.rel (%p236) target = $region36
        $region35: #{tpu_custom_call.1} parent=27 // pred_region
          %p239 = scmp.lt.s32.totalorder %s22, 1
          %s240 = scalar_select %p239, %s22, 1
          %s241 = smul.addr %s240, 16
          %s242 = smul.addr %s241, 4
          %s243 = scalar_lea.vmem %s1, %s242
        $region36: #{tpu_custom_call.1} parent=27 // pred_fallthru
          _
        // Predicated region
        $region37: #{tpu_custom_call.1} parent=27 // pred_check
          %p244 = pneg %p101
        $region38: #{tpu_custom_call.1} parent=27 // pred_check_branch
          %246 = sbr.rel (%p244) target = $region40
        $region39: #{tpu_custom_call.1} parent=27 // pred_region
          %p247 = scmp.lt.s32.totalorder %s22, 1
          %s248 = scalar_select %p247, %s22, 1
          %s249 = smul.addr %s248, 16
          %s250 = smul.addr %s249, 4
          %s251 = scalar_lea.vmem %s2, %s250
        $region40: #{tpu_custom_call.1} parent=27 // pred_fallthru
          _
      $region28: #{tpu_custom_call.1} parent=5 // pred_fallthru
        _
      %p252 = scmp.le.s32.totalorder 1, %s15
      %p253 = scmp.lt.s32.totalorder %s15, 3
      %p254 = pnand %p252, %p253
      %p255 = pneg %p254
      // Predicated region
      $region41: #{tpu_custom_call.1} parent=5 // pred_check
        _
      $region42: #{tpu_custom_call.1} parent=5 // pred_check_branch
        %257 = sbr.rel (%p254) target = $region44
      $region43: #{tpu_custom_call.1} parent=5 // pred_region
        %s258 = ssub.s32 %s15, 1
        %p259 = scmp.lt.s32.totalorder %s24, 1
        %s260 = scalar_select %p259, %s24, 1
        %p261 = scmp.lt.s32.totalorder %s25, 0
        %s262 = scalar_select %p261, %s25, 0
        %s263 = sadd.s32 %s262, %s260
        %s264 = smul.addr %s263, 8
        %s265 = scalar_lea.vmem %s0, %s264
        %p266 = pneg %p55
        %p267 = pneg %p52
        %p268 = scmp.lt.s32.totalorder %s24, 1
        %s269 = scalar_select %p268, %s24, 1
        %s270 = smul.addr %s269, 16
        %s271 = smul.addr %s270, 4
        %s272 = scalar_lea.vmem %s1, %s271
        %p273 = pneg %p81
        %p274 = pneg %p78
        %p275 = scmp.lt.s32.totalorder %s24, 1
        %s276 = scalar_select %p275, %s24, 1
        %s277 = smul.addr %s276, 16
        %s278 = smul.addr %s277, 4
        %s279 = scalar_lea.vmem %s2, %s278
        %p280 = pneg %p107
        %p281 = pneg %p104
        %p282 = pneg %p128
        %p283 = pneg %p125
        %p284 = pneg %p149
        %p285 = pneg %p146
        %p286 = pneg %p170
        %p287 = pneg %p167
        %p288 = pneg %p198
        %p289 = pneg %p195
        %s290 = sand.u32 %s185, 1
        %s291 = scalar_lea.sflag [#allocation4], %s290
        %s292 = sand.u32 %s185, 1
        %s293 = smul.addr %s292, 8
        %s294 = scalar_lea.vmem [#allocation3], %s293
        %p295 = scmp.lt.s32.totalorder %s24, 1
        %s296 = scalar_select %p295, %s24, 1
        %p297 = scmp.lt.s32.totalorder %s25, 0
        %s298 = scalar_select %p297, %s25, 0
        %s299 = sadd.s32 %s298, %s296
        %s300 = smul.addr %s299, 8
        %s301 = scalar_lea.vmem %s0, %s300
        %p302 = scmp.lt.s32.totalorder %s24, 1
        %s303 = scalar_select %p302, %s24, 1
        %s304 = smul.addr %s303, 16
        %s305 = smul.addr %s304, 4
        %s306 = scalar_lea.vmem %s1, %s305
        %p307 = scmp.lt.s32.totalorder %s24, 1
        %s308 = scalar_select %p307, %s24, 1
        %s309 = smul.addr %s308, 16
        %s310 = smul.addr %s309, 4
        %s311 = scalar_lea.vmem %s2, %s310
        %v313 = vld [vmem:[%s301] sm:$0xff]
        %v314 = vpack.c.bf16 %v313, %v313
        %v315 = vld [vmem:[%s3] sm:$0xf]
        %v316 = vld [vmem:[%s3 + $0x4] sm:$0xf]
        %v317 = vld [vmem:[%s3 + $0x8] sm:$0xf]
        %v318 = vld [vmem:[%s3 + $0xc] sm:$0xf]
        %v323 = vunpack.c.l.b16 %v315
        %v324 = vunpack.c.l.b16 %v316
        %v325 = vunpack.c.l.b16 %v317
        %v326 = vunpack.c.l.b16 %v318
        %v327 = vpack.c.b16 %v324, %v323
        %v328 = vpack.c.b16 %v326, %v325
        %vm331 = vcmask 261120
        %v333 = vsel %vm331, %v314, 0
        %335 = vmatprep.subr.bf16.mxu0 0
        %336 = vmatpush1.bf16.msra.mxu0 %v327
        %337 = vmatprep.subr.bf16.mxu0 0
        %338 = vmatpush1.bf16.msra.mxu0 %v328
        %339 = vmatprep.subr.bf16.mxu0 0
        %340 = vmatpush1.bf16.msra.mxu0 0
        %341 = vmatprep.subr.bf16.mxu0 0
        %342 = vmatpush1.bf16.msra.mxu0 0
        %343 = vmatprep.subr.bf16.mxu0 0
        %344 = vmatpush1.bf16.msra.mxu0 0
        %345 = vmatprep.subr.bf16.mxu0 0
        %346 = vmatpush1.bf16.msra.mxu0 0
        %347 = vmatprep.subr.bf16.mxu0 0
        %348 = vmatpush1.bf16.msra.mxu0 0
        %349 = vmatprep.subr.bf16.mxu0 0
        %350 = vmatpush1.bf16.msra.mxu0 0
        %351 = vmatprep.subr.bf16.mxu0 0
        %352 = vmatpush1.bf16.msra.mxu0 0
        %353 = vmatprep.subr.bf16.mxu0 0
        %354 = vmatpush1.bf16.msra.mxu0 0
        %355 = vmatprep.subr.bf16.mxu0 0
        %356 = vmatpush1.bf16.msra.mxu0 0
        %357 = vmatprep.subr.bf16.mxu0 0
        %358 = vmatpush1.bf16.msra.mxu0 0
        %359 = vmatprep.subr.bf16.mxu0 0
        %360 = vmatpush1.bf16.msra.mxu0 0
        %361 = vmatprep.subr.bf16.mxu0 0
        %362 = vmatpush1.bf16.msra.mxu0 0
        %363 = vmatprep.subr.bf16.mxu0 0
        %364 = vmatpush1.bf16.msra.mxu0 0
        %365 = vmatprep.subr.bf16.mxu0 0
        %366 = vmatpush1.bf16.msra.mxu0 0
        %367 = vmatprep.mubr.bf16.mxu0 0
        %368 = vmatmul.mubr.bf16.gmra.mrb[0].mxu0 %v333
        %v369 = vpop.f32.mrb[0].mxu0
        %v370 = vadd.f32 0.0, %v369
        %v371 = vpop.f32.mrb[0].mxu0
        %v372 = vpop.f32.mrb[0].mxu0
        %v373 = vpop.f32.mrb[0].mxu0
        %374 = vdwg.mxu0
        %v375 = vmul.f32 %v370, 0.25
        %v376 = vpack.c.bf16 %v375, %v375
        %v377 = vld [vmem:[%s306] sm:$0xf]
        %v378 = vld [vmem:[%s306 + $0x4] sm:$0xf]
        %v379 = vld [vmem:[%s306 + $0x8] sm:$0xf]
        %v380 = vld [vmem:[%s306 + $0xc] sm:$0xf]
        %v381 = vld [vmem:[%s306 + $0x10] sm:$0xf]
        %v382 = vld [vmem:[%s306 + $0x14] sm:$0xf]
        %v383 = vld [vmem:[%s306 + $0x18] sm:$0xf]
        %v384 = vld [vmem:[%s306 + $0x1c] sm:$0xf]
        %v385 = vld [vmem:[%s306 + $0x20] sm:$0xf]
        %v386 = vld [vmem:[%s306 + $0x24] sm:$0xf]
        %v387 = vld [vmem:[%s306 + $0x28] sm:$0xf]
        %v388 = vld [vmem:[%s306 + $0x2c] sm:$0xf]
        %v389 = vld [vmem:[%s306 + $0x30] sm:$0xf]
        %v390 = vld [vmem:[%s306 + $0x34] sm:$0xf]
        %v391 = vld [vmem:[%s306 + $0x38] sm:$0xf]
        %v392 = vld [vmem:[%s306 + $0x3c] sm:$0xf]
        %v393 = vld [vmem:[%s311] sm:$0xf]
        %v394 = vld [vmem:[%s311 + $0x4] sm:$0xf]
        %v395 = vld [vmem:[%s311 + $0x8] sm:$0xf]
        %v396 = vld [vmem:[%s311 + $0xc] sm:$0xf]
        %v397 = vld [vmem:[%s311 + $0x10] sm:$0xf]
        %v398 = vld [vmem:[%s311 + $0x14] sm:$0xf]
        %v399 = vld [vmem:[%s311 + $0x18] sm:$0xf]
        %v400 = vld [vmem:[%s311 + $0x1c] sm:$0xf]
        %v401 = vld [vmem:[%s311 + $0x20] sm:$0xf]
        %v402 = vld [vmem:[%s311 + $0x24] sm:$0xf]
        %v403 = vld [vmem:[%s311 + $0x28] sm:$0xf]
        %v404 = vld [vmem:[%s311 + $0x2c] sm:$0xf]
        %v405 = vld [vmem:[%s311 + $0x30] sm:$0xf]
        %v406 = vld [vmem:[%s311 + $0x34] sm:$0xf]
        %v407 = vld [vmem:[%s311 + $0x38] sm:$0xf]
        %v408 = vld [vmem:[%s311 + $0x3c] sm:$0xf]
        %v425 = vunpack.c.l.b16 %v377
        %v426 = vunpack.c.l.b16 %v378
        %v427 = vunpack.c.l.b16 %v379
        %v428 = vunpack.c.l.b16 %v380
        %v429 = vunpack.c.l.b16 %v381
        %v430 = vunpack.c.l.b16 %v382
        %v431 = vunpack.c.l.b16 %v383
        %v432 = vunpack.c.l.b16 %v384
        %v433 = vunpack.c.l.b16 %v385
        %v434 = vunpack.c.l.b16 %v386
        %v435 = vunpack.c.l.b16 %v387
        %v436 = vunpack.c.l.b16 %v388
        %v437 = vunpack.c.l.b16 %v389
        %v438 = vunpack.c.l.b16 %v390
        %v439 = vunpack.c.l.b16 %v391
        %v440 = vunpack.c.l.b16 %v392
        %v441 = vpack.c.b16 %v426, %v425
        %v442 = vpack.c.b16 %v428, %v427
        %v443 = vpack.c.b16 %v430, %v429
        %v444 = vpack.c.b16 %v432, %v431
        %v445 = vpack.c.b16 %v434, %v433
        %v446 = vpack.c.b16 %v436, %v435
        %v447 = vpack.c.b16 %v438, %v437
        %v448 = vpack.c.b16 %v440, %v439
        %vm449 = vcmask 130048
        %v451 = vsel %vm449, %v376, 0
        %v454 = vsel %vm449, %v441, 0
        %v457 = vsel %vm449, %v442, 0
        %v460 = vsel %vm449, %v443, 0
        %v463 = vsel %vm449, %v444, 0
        %v466 = vsel %vm449, %v445, 0
        %v469 = vsel %vm449, %v446, 0
        %v472 = vsel %vm449, %v447, 0
        %v475 = vsel %vm449, %v448, 0
        %477 = vmatprep.subr.bf16.mxu0 0
        %478 = vmatpush1.bf16.xpose.msra.mxu0 %v454
        %479 = vmatprep.subr.bf16.mxu0 0
        %480 = vmatpush1.bf16.xpose.msra.mxu0 %v457
        %481 = vmatprep.subr.bf16.mxu0 0
        %482 = vmatpush1.bf16.xpose.msra.mxu0 %v460
        %483 = vmatprep.subr.bf16.mxu0 0
        %484 = vmatpush1.bf16.xpose.msra.mxu0 %v463
        %485 = vmatprep.subr.bf16.mxu0 0
        %486 = vmatpush1.bf16.xpose.msra.mxu0 %v466
        %487 = vmatprep.subr.bf16.mxu0 0
        %488 = vmatpush1.bf16.xpose.msra.mxu0 %v469
        %489 = vmatprep.subr.bf16.mxu0 0
        %490 = vmatpush1.bf16.xpose.msra.mxu0 %v472
        %491 = vmatprep.subr.bf16.mxu0 0
        %492 = vmatpush1.bf16.xpose.msra.mxu0 %v475
        %493 = vmatprep.subr.bf16.mxu0 0
        %494 = vmatpush1.bf16.xpose.msra.mxu0 0
        %495 = vmatprep.subr.bf16.mxu0 0
        %496 = vmatpush1.bf16.xpose.msra.mxu0 0
        %497 = vmatprep.subr.bf16.mxu0 0
        %498 = vmatpush1.bf16.xpose.msra.mxu0 0
        %499 = vmatprep.subr.bf16.mxu0 0
        %500 = vmatpush1.bf16.xpose.msra.mxu0 0
        %501 = vmatprep.subr.bf16.mxu0 0
        %502 = vmatpush1.bf16.xpose.msra.mxu0 0
        %503 = vmatprep.subr.bf16.mxu0 0
        %504 = vmatpush1.bf16.xpose.msra.mxu0 0
        %505 = vmatprep.subr.bf16.mxu0 0
        %506 = vmatpush1.bf16.xpose.msra.mxu0 0
        %507 = vmatprep.subr.bf16.mxu0 0
        %508 = vmatpush1.bf16.xpose.msra.mxu0 0
        %509 = vmatprep.mubr.bf16.mxu0 0
        %510 = vmatmul.mubr.bf16.gmra.mrb[0].mxu0 %v451
        %v511 = vpop.f32.mrb[0].mxu0
        %v512 = vadd.f32 0.0, %v511
        %v513 = vpop.f32.mrb[0].mxu0
        %v514 = vpop.f32.mrb[0].mxu0
        %v515 = vpop.f32.mrb[0].mxu0
        %516 = vdwg.mxu0
        %v517 = vlaneseq
        %v518 = vand.u32 %v517, 127
        %vm519 = vcmp.lt.s32.totalorder %v518, 8
        %v520 = vsel %vm519, %v512, -1e+30
        %521 = vmax.xlane.f32.xlu0 %v520
        %v522 = vpop.xlane.xlu0 %521
        %v523 = vsub.f32 %v520, %v522
        %v524 = vmul.f32 %v523, 1.442695
        %v525 = vpow.pop %v524
        %526 = vadd.xlane.f32.xlu0 %v525
        %v527 = vpop.xlane.xlu0 %526
        %v528 = vrcp.pop %v527
        %v529 = vmul.f32 %v525, %v528
        %v530 = vpack.c.bf16 %v529, %v529
        %v547 = vunpack.c.l.b16 %v393
        %v548 = vunpack.c.l.b16 %v394
        %v549 = vunpack.c.l.b16 %v395
        %v550 = vunpack.c.l.b16 %v396
        %v551 = vunpack.c.l.b16 %v397
        %v552 = vunpack.c.l.b16 %v398
        %v553 = vunpack.c.l.b16 %v399
        %v554 = vunpack.c.l.b16 %v400
        %v555 = vunpack.c.l.b16 %v401
        %v556 = vunpack.c.l.b16 %v402
        %v557 = vunpack.c.l.b16 %v403
        %v558 = vunpack.c.l.b16 %v404
        %v559 = vunpack.c.l.b16 %v405
        %v560 = vunpack.c.l.b16 %v406
        %v561 = vunpack.c.l.b16 %v407
        %v562 = vunpack.c.l.b16 %v408
        %v563 = vpack.c.b16 %v548, %v547
        %v564 = vpack.c.b16 %v550, %v549
        %v565 = vpack.c.b16 %v552, %v551
        %v566 = vpack.c.b16 %v554, %v553
        %v567 = vpack.c.b16 %v556, %v555
        %v568 = vpack.c.b16 %v558, %v557
        %v569 = vpack.c.b16 %v560, %v559
        %v570 = vpack.c.b16 %v562, %v561
        %579 = vmatprep.subr.bf16.mxu0 0
        %580 = vmatpush1.bf16.msra.mxu0 %v563
        %581 = vmatprep.subr.bf16.mxu0 0
        %582 = vmatpush1.bf16.msra.mxu0 %v564
        %583 = vmatprep.subr.bf16.mxu0 0
        %584 = vmatpush1.bf16.msra.mxu0 %v565
        %585 = vmatprep.subr.bf16.mxu0 0
        %586 = vmatpush1.bf16.msra.mxu0 %v566
        %587 = vmatprep.subr.bf16.mxu0 0
        %588 = vmatpush1.bf16.msra.mxu0 %v567
        %589 = vmatprep.subr.bf16.mxu0 0
        %590 = vmatpush1.bf16.msra.mxu0 %v568
        %591 = vmatprep.subr.bf16.mxu0 0
        %592 = vmatpush1.bf16.msra.mxu0 %v569
        %593 = vmatprep.subr.bf16.mxu0 0
        %594 = vmatpush1.bf16.msra.mxu0 %v570
        %595 = vmatprep.subr.bf16.mxu0 0
        %596 = vmatpush1.bf16.msra.mxu0 0
        %597 = vmatprep.subr.bf16.mxu0 0
        %598 = vmatpush1.bf16.msra.mxu0 0
        %599 = vmatprep.subr.bf16.mxu0 0
        %600 = vmatpush1.bf16.msra.mxu0 0
        %601 = vmatprep.subr.bf16.mxu0 0
        %602 = vmatpush1.bf16.msra.mxu0 0
        %603 = vmatprep.subr.bf16.mxu0 0
        %604 = vmatpush1.bf16.msra.mxu0 0
        %605 = vmatprep.subr.bf16.mxu0 0
        %606 = vmatpush1.bf16.msra.mxu0 0
        %607 = vmatprep.subr.bf16.mxu0 0
        %608 = vmatpush1.bf16.msra.mxu0 0
        %609 = vmatprep.subr.bf16.mxu0 0
        %610 = vmatpush1.bf16.msra.mxu0 0
        %611 = vmatprep.mubr.bf16.mxu0 0
        %612 = vmatmul.mubr.bf16.gmra.mrb[0].mxu0 %v530
        %v613 = vpop.f32.mrb[0].mxu0
        %v614 = vadd.f32 0.0, %v613
        %v615 = vpop.f32.mrb[0].mxu0
        %v616 = vpop.f32.mrb[0].mxu0
        %v617 = vpop.f32.mrb[0].mxu0
        %618 = vdwg.mxu0
        %619 = vst.msk [vmem:[#allocation2] sm:$0xff] %vm449, %v614
        %621 = vrot.lane.b32.xlu0 %v376, 112
        %v622 = vpop.permute.xlu0 %621
        %623 = vrot.lane.b32.xlu0 %v441, 112
        %v624 = vpop.permute.xlu0 %623
        %625 = vrot.lane.b32.xlu0 %v442, 112
        %v626 = vpop.permute.xlu0 %625
        %627 = vrot.lane.b32.xlu0 %v443, 112
        %v628 = vpop.permute.xlu0 %627
        %629 = vrot.lane.b32.xlu0 %v444, 112
        %v630 = vpop.permute.xlu0 %629
        %631 = vrot.lane.b32.xlu0 %v445, 112
        %v632 = vpop.permute.xlu0 %631
        %633 = vrot.lane.b32.xlu0 %v446, 112
        %v634 = vpop.permute.xlu0 %633
        %635 = vrot.lane.b32.xlu0 %v447, 112
        %v636 = vpop.permute.xlu0 %635
        %637 = vrot.lane.b32.xlu0 %v448, 112
        %v638 = vpop.permute.xlu0 %637
        %v640 = vsel %vm449, %v622, 0
        %v643 = vsel %vm449, %v624, 0
        %v646 = vsel %vm449, %v626, 0
        %v649 = vsel %vm449, %v628, 0
        %v652 = vsel %vm449, %v630, 0
        %v655 = vsel %vm449, %v632, 0
        %v658 = vsel %vm449, %v634, 0
        %v661 = vsel %vm449, %v636, 0
        %v664 = vsel %vm449, %v638, 0
        %666 = vmatprep.subr.bf16.mxu0 0
        %667 = vmatpush1.bf16.xpose.msra.mxu0 %v643
        %668 = vmatprep.subr.bf16.mxu0 0
        %669 = vmatpush1.bf16.xpose.msra.mxu0 %v646
        %670 = vmatprep.subr.bf16.mxu0 0
        %671 = vmatpush1.bf16.xpose.msra.mxu0 %v649
        %672 = vmatprep.subr.bf16.mxu0 0
        %673 = vmatpush1.bf16.xpose.msra.mxu0 %v652
        %674 = vmatprep.subr.bf16.mxu0 0
        %675 = vmatpush1.bf16.xpose.msra.mxu0 %v655
        %676 = vmatprep.subr.bf16.mxu0 0
        %677 = vmatpush1.bf16.xpose.msra.mxu0 %v658
        %678 = vmatprep.subr.bf16.mxu0 0
        %679 = vmatpush1.bf16.xpose.msra.mxu0 %v661
        %680 = vmatprep.subr.bf16.mxu0 0
        %681 = vmatpush1.bf16.xpose.msra.mxu0 %v664
        %682 = vmatprep.subr.bf16.mxu0 0
        %683 = vmatpush1.bf16.xpose.msra.mxu0 0
        %684 = vmatprep.subr.bf16.mxu0 0
        %685 = vmatpush1.bf16.xpose.msra.mxu0 0
        %686 = vmatprep.subr.bf16.mxu0 0
        %687 = vmatpush1.bf16.xpose.msra.mxu0 0
        %688 = vmatprep.subr.bf16.mxu0 0
        %689 = vmatpush1.bf16.xpose.msra.mxu0 0
        %690 = vmatprep.subr.bf16.mxu0 0
        %691 = vmatpush1.bf16.xpose.msra.mxu0 0
        %692 = vmatprep.subr.bf16.mxu0 0
        %693 = vmatpush1.bf16.xpose.msra.mxu0 0
        %694 = vmatprep.subr.bf16.mxu0 0
        %695 = vmatpush1.bf16.xpose.msra.mxu0 0
        %696 = vmatprep.subr.bf16.mxu0 0
        %697 = vmatpush1.bf16.xpose.msra.mxu0 0
        %698 = vmatprep.mubr.bf16.mxu0 0
        %699 = vmatmul.mubr.bf16.gmra.mrb[0].mxu0 %v640
        %v700 = vpop.f32.mrb[0].mxu0
        %v701 = vadd.f32 0.0, %v700
        %v702 = vpop.f32.mrb[0].mxu0
        %v703 = vpop.f32.mrb[0].mxu0
        %v704 = vpop.f32.mrb[0].mxu0
        %705 = vdwg.mxu0
        %v706 = vsel %vm519, %v701, -1e+30
        %707 = vmax.xlane.f32.xlu0 %v706
        %v708 = vpop.xlane.xlu0 %707
        %v709 = vsub.f32 %v706, %v708
        %v710 = vmul.f32 %v709, 1.442695
        %v711 = vpow.pop %v710
        %712 = vadd.xlane.f32.xlu0 %v711
        %v713 = vpop.xlane.xlu0 %712
        %v714 = vrcp.pop %v713
        %v715 = vmul.f32 %v711, %v714
        %v716 = vpack.c.bf16 %v715, %v715
        %717 = vrot.lane.b32.xlu0 %v563, 112
        %v718 = vpop.permute.xlu0 %717
        %719 = vrot.lane.b32.xlu0 %v564, 112
        %v720 = vpop.permute.xlu0 %719
        %721 = vrot.lane.b32.xlu0 %v565, 112
        %v722 = vpop.permute.xlu0 %721
        %723 = vrot.lane.b32.xlu0 %v566, 112
        %v724 = vpop.permute.xlu0 %723
        %725 = vrot.lane.b32.xlu0 %v567, 112
        %v726 = vpop.permute.xlu0 %725
        %727 = vrot.lane.b32.xlu0 %v568, 112
        %v728 = vpop.permute.xlu0 %727
        %729 = vrot.lane.b32.xlu0 %v569, 112
        %v730 = vpop.permute.xlu0 %729
        %731 = vrot.lane.b32.xlu0 %v570, 112
        %v732 = vpop.permute.xlu0 %731
        %741 = vmatprep.subr.bf16.mxu0 0
        %742 = vmatpush1.bf16.msra.mxu0 %v718
        %743 = vmatprep.subr.bf16.mxu0 0
        %744 = vmatpush1.bf16.msra.mxu0 %v720
        %745 = vmatprep.subr.bf16.mxu0 0
        %746 = vmatpush1.bf16.msra.mxu0 %v722
        %747 = vmatprep.subr.bf16.mxu0 0
        %748 = vmatpush1.bf16.msra.mxu0 %v724
        %749 = vmatprep.subr.bf16.mxu0 0
        %750 = vmatpush1.bf16.msra.mxu0 %v726
        %751 = vmatprep.subr.bf16.mxu0 0
        %752 = vmatpush1.bf16.msra.mxu0 %v728
        %753 = vmatprep.subr.bf16.mxu0 0
        %754 = vmatpush1.bf16.msra.mxu0 %v730
        %755 = vmatprep.subr.bf16.mxu0 0
        %756 = vmatpush1.bf16.msra.mxu0 %v732
        %757 = vmatprep.subr.bf16.mxu0 0
        %758 = vmatpush1.bf16.msra.mxu0 0
        %759 = vmatprep.subr.bf16.mxu0 0
        %760 = vmatpush1.bf16.msra.mxu0 0
        %761 = vmatprep.subr.bf16.mxu0 0
        %762 = vmatpush1.bf16.msra.mxu0 0
        %763 = vmatprep.subr.bf16.mxu0 0
        %764 = vmatpush1.bf16.msra.mxu0 0
        %765 = vmatprep.subr.bf16.mxu0 0
        %766 = vmatpush1.bf16.msra.mxu0 0
        %767 = vmatprep.subr.bf16.mxu0 0
        %768 = vmatpush1.bf16.msra.mxu0 0
        %769 = vmatprep.subr.bf16.mxu0 0
        %770 = vmatpush1.bf16.msra.mxu0 0
        %771 = vmatprep.subr.bf16.mxu0 0
        %772 = vmatpush1.bf16.msra.mxu0 0
        %773 = vmatprep.mubr.bf16.mxu0 0
        %774 = vmatmul.mubr.bf16.gmra.mrb[0].mxu0 %v716
        %v775 = vpop.f32.mrb[0].mxu0
        %v776 = vadd.f32 0.0, %v775
        %v777 = vpop.f32.mrb[0].mxu0
        %v778 = vpop.f32.mrb[0].mxu0
        %v779 = vpop.f32.mrb[0].mxu0
        %780 = vdwg.mxu0
        %782 = vrot.lane.b32.xlu0 %v776, 16
        %v783 = vpop.permute.xlu0 %782
        %vm785 = vcmask 261248
        %786 = vst.msk [vmem:[#allocation2] sm:$0xff] %vm785, %v783
        %v787 = vld [vmem:[#allocation2] sm:$0xff]
        %v788 = vpack.c.bf16 %v787, %v787
        %v789 = vld [vmem:[%s4] sm:$0xf]
        %v790 = vld [vmem:[%s4 + $0x4] sm:$0xf]
        %v791 = vld [vmem:[%s4 + $0x8] sm:$0xf]
        %v792 = vld [vmem:[%s4 + $0xc] sm:$0xf]
        %v793 = vld [vmem:[%s5] sm:$0x1]
        %v795 = vlaneseq
        %v796 = vshrl.u32 %v795, 7
        %v797 = vsub.s32 0, %v796
        %v798 = vrot.slane %v793, %v797
        %v804 = vunpack.c.l.b16 %v789
        %v805 = vunpack.c.l.b16 %v790
        %v806 = vunpack.c.l.b16 %v791
        %v807 = vunpack.c.l.b16 %v792
        %v808 = vpack.c.b16 %v805, %v804
        %v809 = vpack.c.b16 %v807, %v806
        %v813 = vsel %vm331, %v788, 0
        %815 = vmatprep.subr.bf16.mxu0 0
        %816 = vmatpush1.bf16.msra.mxu0 %v808
        %817 = vmatprep.subr.bf16.mxu0 0
        %818 = vmatpush1.bf16.msra.mxu0 %v809
        %819 = vmatprep.subr.bf16.mxu0 0
        %820 = vmatpush1.bf16.msra.mxu0 0
        %821 = vmatprep.subr.bf16.mxu0 0
        %822 = vmatpush1.bf16.msra.mxu0 0
        %823 = vmatprep.subr.bf16.mxu0 0
        %824 = vmatpush1.bf16.msra.mxu0 0
        %825 = vmatprep.subr.bf16.mxu0 0
        %826 = vmatpush1.bf16.msra.mxu0 0
        %827 = vmatprep.subr.bf16.mxu0 0
        %828 = vmatpush1.bf16.msra.mxu0 0
        %829 = vmatprep.subr.bf16.mxu0 0
        %830 = vmatpush1.bf16.msra.mxu0 0
        %831 = vmatprep.subr.bf16.mxu0 0
        %832 = vmatpush1.bf16.msra.mxu0 0
        %833 = vmatprep.subr.bf16.mxu0 0
        %834 = vmatpush1.bf16.msra.mxu0 0
        %835 = vmatprep.subr.bf16.mxu0 0
        %836 = vmatpush1.bf16.msra.mxu0 0
        %837 = vmatprep.subr.bf16.mxu0 0
        %838 = vmatpush1.bf16.msra.mxu0 0
        %839 = vmatprep.subr.bf16.mxu0 0
        %840 = vmatpush1.bf16.msra.mxu0 0
        %841 = vmatprep.subr.bf16.mxu0 0
        %842 = vmatpush1.bf16.msra.mxu0 0
        %843 = vmatprep.subr.bf16.mxu0 0
        %844 = vmatpush1.bf16.msra.mxu0 0
        %845 = vmatprep.subr.bf16.mxu0 0
        %846 = vmatpush1.bf16.msra.mxu0 0
        %847 = vmatprep.mubr.bf16.mxu0 0
        %848 = vmatmul.mubr.bf16.gmra.mrb[0].mxu0 %v813
        %v849 = vpop.f32.mrb[0].mxu0
        %v850 = vadd.f32 %v798, %v849
        %v851 = vpop.f32.mrb[0].mxu0
        %v852 = vpop.f32.mrb[0].mxu0
        %v853 = vpop.f32.mrb[0].mxu0
        %854 = vdwg.mxu0
        %855 = vst.msk [vmem:[%s294] sm:$0xff] %vm331, %v850
        %s856 = sand.u32 %s185, 1
        %s857 = scalar_lea.sflag [#allocation4], %s856
        %s858 = sand.u32 %s185, 1
        %s859 = smul.addr %s858, 8
        %s860 = scalar_lea.vmem [#allocation3], %s859
        // Predicated region
        $region45: #{tpu_custom_call.1} parent=43 // pred_check
          %p861 = pneg %p195
        $region46: #{tpu_custom_call.1} parent=43 // pred_check_branch
          %863 = sbr.rel (%p861) target = $region48
        $region47: #{tpu_custom_call.1} parent=43 // pred_region
          %s865 = ssub.s32 128, 128
          %866 = vsyncadd %s857, %s865
          %s867 = sadd.s32 %s25, %s24
          %s868 = smul.addr %s867, 128
          %s869 = scalar_lea.hbm %s6, %s868
          %s871 = sshll.u32 %s860, 4
          %s872 = int_to_ptr.vmem [resolvable:$true] %s871
          %874 = dma.vmem_to_hbm [thread:$0]  %s872, 128, %s869, %s857
        $region48: #{tpu_custom_call.1} parent=43 // pred_fallthru
          _
      $region44: #{tpu_custom_call.1} parent=5 // pred_fallthru
        _
      %p875 = scmp.le.s32.totalorder 2, %s15
      // Predicated region
      $region49: #{tpu_custom_call.1} parent=5 // pred_check
        %p876 = pneg %p875
      $region50: #{tpu_custom_call.1} parent=5 // pred_check_branch
        %878 = sbr.rel (%p876) target = $region52
      $region51: #{tpu_custom_call.1} parent=5 // pred_region
        %s879 = ssub.s32 %s15, 2
        // Predicated region
        $region53: #{tpu_custom_call.1} parent=51 // pred_check
          %p880 = pneg %p201
        $region54: #{tpu_custom_call.1} parent=51 // pred_check_branch
          %882 = sbr.rel (%p880) target = $region56
        $region55: #{tpu_custom_call.1} parent=51 // pred_region
          %s883 = sand.u32 %s186, 1
          %s884 = scalar_lea.sflag [#allocation4], %s883
          %s885 = sand.u32 %s186, 1
          %s886 = smul.addr %s885, 8
          %s887 = scalar_lea.vmem [#allocation3], %s886
          %888 = dma.done %s884, 128
        $region56: #{tpu_custom_call.1} parent=51 // pred_fallthru
          _
      $region52: #{tpu_custom_call.1} parent=5 // pred_fallthru
        _
    $region6: #{tpu_custom_call.1} parent=1 // loop_footer
      %s19 = sadd.s32 1, %s15
    $region7: #{tpu_custom_call.1} parent=1 // loop_footer_branch
      %14 = sbr.rel target = $region3
    $region8: #{tpu_custom_call.1} parent=1 // loop_exit
      _
    %889 = vsyncpa [#allocation4], 1
    %s890 = scalar_lea.sflag [#allocation4], 1
    %891 = vsyncpa %s890, 1

// kernel: tpu_custom_call.1
$region0: #{tpu_custom_call.1}
  #allocation0 [shape = 'u32[]', space=smem, size = 0x4, offset = 0x4, fixed_abs, tag = 'smem constant byte address 0x4 - core index']
  #allocation1 [shape = 'u32[144,128]{1,0:T(1,128)}', space=vmem, size = 0x12000, scoped, tag = 'internal scratch']
  #allocation2 [shape = 'f32[8,32]{1,0:T(8,128)}', space=vmem, size = 0x1000, scoped, tag = 'scratch operand']
  %s0 = inlined_call_operand.vmem [shape: f32[2,8,32], index: 0, kind: input, shape index: {}]
  %s1 = inlined_call_operand.vmem [shape: bf16[2,128,32], index: 1, kind: input, shape index: {}]
  %s2 = inlined_call_operand.vmem [shape: bf16[2,128,32], index: 2, kind: input, shape index: {}]
  %s3 = inlined_call_operand.vmem [shape: bf16[32,32], index: 3, kind: input, shape index: {}]
  %s4 = inlined_call_operand.vmem [shape: bf16[32,32], index: 4, kind: input, shape index: {}]
  %s5 = inlined_call_operand.vmem [shape: f32[1,32], index: 5, kind: input, shape index: {}]
  %s6 = inlined_call_operand.hbm [shape: f32[2,8,32], index: 6, kind: output, shape index: {}]
  %s7 = sld [smem:[#allocation0]]
  $region57: #{tpu_custom_call.1} parent=0
    _
  %s9 = ssub.s32 1, %s7
  %s10 = scalar_select 0, %s9, %s7
  $region1: #{tpu_custom_call.1} parent=0
    #allocation3 [shape = 'u8[8192]{0}', space=vmem, size = 0x2000, scoped, tag = 'output window, operand 0']
    #allocation4 [shape = 's32[2]{0}', space=sflag, size = 0x8, scoped, tag = 'scoped memory for tpu_custom_call.1']
    %11 = vsyncpa [#allocation4], 0
    %s12 = scalar_lea.sflag [#allocation4], 1
    %13 = vsyncpa %s12, 0
    loop: start=0, step=1, limit=4
    $region2: #{tpu_custom_call.1} parent=1 // loop_pre_header
      _
    $region3: #{tpu_custom_call.1} parent=1 // loop_header
      %s15 = sphi 0, %s19
      %p16 = scmp.ge.s32.totalorder %s15, 4
      %s22 = sphi 0, %s34
      %s23 = sphi 0, %s30
      %s24 = sphi 0, %s22
      %s25 = sphi 0, %s23
      %s26 = sphi 0, %s24
      %s27 = sphi 0, %s25
      %s39 = sphi 0, %s41
      %s42 = sphi 0, %s39
      %s43 = sphi 0, %s42
      %s59 = sphi 0, %s43
      %s65 = sphi 0, %s67
      %s68 = sphi 0, %s65
      %s69 = sphi 0, %s68
      %s85 = sphi 0, %s69
      %s91 = sphi 0, %s93
      %s94 = sphi 0, %s91
      %s95 = sphi 0, %s94
      %s111 = sphi 0, %s95
      %s115 = sphi 0, %s115
      %s117 = sphi 0, %s115
      %s118 = sphi 0, %s117
      %s132 = sphi 0, %s118
      %s136 = sphi 0, %s136
      %s138 = sphi 0, %s136
      %s139 = sphi 0, %s138
      %s153 = sphi 0, %s139
      %s157 = sphi 0, %s157
      %s159 = sphi 0, %s157
      %s160 = sphi 0, %s159
      %s174 = sphi 0, %s160
      %s182 = sphi 0, %s184
      %s185 = sphi 0, %s182
      %s186 = sphi 0, %s185
      %s202 = sphi 0, %s186
    $region4: #{tpu_custom_call.1} parent=1 // loop_header_branch
      %18 = sbr.rel (%p16) target = $region8
    $region5: #{tpu_custom_call.1} parent=1 // loop_body
      %s20 = ssub.s32 %s15, 1
      %s21 = ssub.s32 %s15, 2
      %s28 = sadd.s32 1, %s23
      %p29 = scmp.ge.s32.totalorder %s28, 1
      %s30 = scalar_select %p29, 0, %s28
      %s31 = sadd.s32 1, %s22
      %s32 = scalar_select %p29, %s31, %s22
      %p33 = scmp.ge.s32.totalorder %s32, 2
      %s34 = scalar_select %p33, 0, %s32
      %s35 = ssub.s32 %s22, %s34
      %s36 = ssub.s32 %s23, %s30
      %s37 = sor.u32 %s35, %s36
      %p38 = scmp.eq.s32.totalorder %s37, 0
      %s40 = sadd.s32 %s39, 1
      %s41 = scalar_select %p38, %s39, %s40
      %p44 = pneg %p38
      %p45 = scmp.eq.s32.totalorder %s15, 1
      %p46 = por %p44, %p45
      %p47 = scmp.ne.s32.totalorder %s39, %s42
      %p48 = scmp.eq.s32.totalorder %s15, 0
      %p49 = por %p47, %p48
      %p50 = scmp.ne.s32.totalorder %s39, %s42
      %p51 = scmp.eq.s32.totalorder %s20, 1
      %p52 = por %p50, %p51
      %p53 = scmp.ne.s32.totalorder %s42, %s43
      %p54 = scmp.eq.s32.totalorder %s20, 0
      %p55 = por %p53, %p54
      %p56 = scmp.ne.s32.totalorder %s42, %s43
      %p57 = scmp.eq.s32.totalorder %s21, 1
      %p58 = por %p56, %p57
      %p60 = scmp.ne.s32.totalorder %s43, %s59
      %p61 = scmp.eq.s32.totalorder %s21, 0
      %p62 = por %p60, %p61
      %s63 = ssub.s32 %s22, %s34
      %p64 = scmp.eq.s32.totalorder %s63, 0
      %s66 = sadd.s32 %s65, 1
      %s67 = scalar_select %p64, %s65, %s66
      %p70 = pneg %p64
      %p71 = scmp.eq.s32.totalorder %s15, 1
      %p72 = por %p70, %p71
      %p73 = scmp.ne.s32.totalorder %s65, %s68
      %p74 = scmp.eq.s32.totalorder %s15, 0
      %p75 = por %p73, %p74
      %p76 = scmp.ne.s32.totalorder %s65, %s68
      %p77 = scmp.eq.s32.totalorder %s20, 1
      %p78 = por %p76, %p77
      %p79 = scmp.ne.s32.totalorder %s68, %s69
      %p80 = scmp.eq.s32.totalorder %s20, 0
      %p81 = por %p79, %p80
      %p82 = scmp.ne.s32.totalorder %s68, %s69
      %p83 = scmp.eq.s32.totalorder %s21, 1
      %p84 = por %p82, %p83
      %p86 = scmp.ne.s32.totalorder %s69, %s85
      %p87 = scmp.eq.s32.totalorder %s21, 0
      %p88 = por %p86, %p87
      %s89 = ssub.s32 %s22, %s34
      %p90 = scmp.eq.s32.totalorder %s89, 0
      %s92 = sadd.s32 %s91, 1
      %s93 = scalar_select %p90, %s91, %s92
      %p96 = pneg %p90
      %p97 = scmp.eq.s32.totalorder %s15, 1
      %p98 = por %p96, %p97
      %p99 = scmp.ne.s32.totalorder %s91, %s94
      %p100 = scmp.eq.s32.totalorder %s15, 0
      %p101 = por %p99, %p100
      %p102 = scmp.ne.s32.totalorder %s91, %s94
      %p103 = scmp.eq.s32.totalorder %s20, 1
      %p104 = por %p102, %p103
      %p105 = scmp.ne.s32.totalorder %s94, %s95
      %p106 = scmp.eq.s32.totalorder %s20, 0
      %p107 = por %p105, %p106
      %p108 = scmp.ne.s32.totalorder %s94, %s95
      %p109 = scmp.eq.s32.totalorder %s21, 1
      %p110 = por %p108, %p109
      %p112 = scmp.ne.s32.totalorder %s95, %s111
      %p113 = scmp.eq.s32.totalorder %s21, 0
      %p114 = por %p112, %p113
      %s116 = sadd.s32 %s115, 1
      %p119 = scmp.eq.s32.totalorder %s15, 1
      %p120 = scmp.ne.s32.totalorder %s115, %s117
      %p121 = scmp.eq.s32.totalorder %s15, 0
      %p122 = por %p120, %p121
      %p123 = scmp.ne.s32.totalorder %s115, %s117
      %p124 = scmp.eq.s32.totalorder %s20, 1
      %p125 = por %p123, %p124
      %p126 = scmp.ne.s32.totalorder %s117, %s118
      %p127 = scmp.eq.s32.totalorder %s20, 0
      %p128 = por %p126, %p127
      %p129 = scmp.ne.s32.totalorder %s117, %s118
      %p130 = scmp.eq.s32.totalorder %s21, 1
      %p131 = por %p129, %p130
      %p133 = scmp.ne.s32.totalorder %s118, %s132
      %p134 = scmp.eq.s32.totalorder %s21, 0
      %p135 = por %p133, %p134
      %s137 = sadd.s32 %s136, 1
      %p140 = scmp.eq.s32.totalorder %s15, 1
      %p141 = scmp.ne.s32.totalorder %s136, %s138
      %p142 = scmp.eq.s32.totalorder %s15, 0
      %p143 = por %p141, %p142
      %p144 = scmp.ne.s32.totalorder %s136, %s138
      %p145 = scmp.eq.s32.totalorder %s20, 1
      %p146 = por %p144, %p145
      %p147 = scmp.ne.s32.totalorder %s138, %s139
      %p148 = scmp.eq.s32.totalorder %s20, 0
      %p149 = por %p147, %p148
      %p150 = scmp.ne.s32.totalorder %s138, %s139
      %p151 = scmp.eq.s32.totalorder %s21, 1
      %p152 = por %p150, %p151
      %p154 = scmp.ne.s32.totalorder %s139, %s153
      %p155 = scmp.eq.s32.totalorder %s21, 0
      %p156 = por %p154, %p155
      %s158 = sadd.s32 %s157, 1
      %p161 = scmp.eq.s32.totalorder %s15, 1
      %p162 = scmp.ne.s32.totalorder %s157, %s159
      %p163 = scmp.eq.s32.totalorder %s15, 0
      %p164 = por %p162, %p163
      %p165 = scmp.ne.s32.totalorder %s157, %s159
      %p166 = scmp.eq.s32.totalorder %s20, 1
      %p167 = por %p165, %p166
      %p168 = scmp.ne.s32.totalorder %s159, %s160
      %p169 = scmp.eq.s32.totalorder %s20, 0
      %p170 = por %p168, %p169
      %p171 = scmp.ne.s32.totalorder %s159, %s160
      %p172 = scmp.eq.s32.totalorder %s21, 1
      %p173 = por %p171, %p172
      %p175 = scmp.ne.s32.totalorder %s160, %s174
      %p176 = scmp.eq.s32.totalorder %s21, 0
      %p177 = por %p175, %p176
      %s178 = ssub.s32 %s22, %s34
      %s179 = ssub.s32 %s23, %s30
      %s180 = sor.u32 %s178, %s179
      %p181 = scmp.eq.s32.totalorder %s180, 0
      %s183 = sadd.s32 %s182, 1
      %s184 = scalar_select %p181, %s182, %s183
      %p187 = pneg %p181
      %p188 = scmp.eq.s32.totalorder %s15, 1
      %p189 = por %p187, %p188
      %p190 = scmp.ne.s32.totalorder %s182, %s185
      %p191 = scmp.eq.s32.totalorder %s15, 0
      %p192 = por %p190, %p191
      %p193 = scmp.ne.s32.totalorder %s182, %s185
      %p194 = scmp.eq.s32.totalorder %s20, 1
      %p195 = por %p193, %p194
      %p196 = scmp.ne.s32.totalorder %s185, %s186
      %p197 = scmp.eq.s32.totalorder %s20, 0
      %p198 = por %p196, %p197
      %p199 = scmp.ne.s32.totalorder %s185, %s186
      %p200 = scmp.eq.s32.totalorder %s21, 1
      %p201 = por %p199, %p200
      %p203 = scmp.ne.s32.totalorder %s186, %s202
      %p204 = scmp.eq.s32.totalorder %s21, 0
      %p205 = por %p203, %p204
      %p206 = scmp.le.s32.totalorder 1, %s15
      %p207 = scmp.lt.s32.totalorder %s15, 3
      %p208 = pnand %p206, %p207
      %p209 = pneg %p208
      // Predicated region
      $region9: #{tpu_custom_call.1} parent=5 // pred_check
        _
      $region10: #{tpu_custom_call.1} parent=5 // pred_check_branch
        %211 = sbr.rel (%p208) target = $region12
      $region11: #{tpu_custom_call.1} parent=5 // pred_region
        %s212 = ssub.s32 %s15, 1
        // Predicated region
        $region13: #{tpu_custom_call.1} parent=11 // pred_check
          %p213 = pneg %p128
        $region14: #{tpu_custom_call.1} parent=11 // pred_check_branch
          %215 = sbr.rel (%p213) target = $region16
        $region15: #{tpu_custom_call.1} parent=11 // pred_region
          _
        $region16: #{tpu_custom_call.1} parent=11 // pred_fallthru
          _
        // Predicated region
        $region17: #{tpu_custom_call.1} parent=11 // pred_check
          %p216 = pneg %p149
        $region18: #{tpu_custom_call.1} parent=11 // pred_check_branch
          %218 = sbr.rel (%p216) target = $region20
        $region19: #{tpu_custom_call.1} parent=11 // pred_region
          _
        $region20: #{tpu_custom_call.1} parent=11 // pred_fallthru
          _
        // Predicated region
        $region21: #{tpu_custom_call.1} parent=11 // pred_check
          %p219 = pneg %p170
        $region22: #{tpu_custom_call.1} parent=11 // pred_check_branch
          %221 = sbr.rel (%p219) target = $region24
        $region23: #{tpu_custom_call.1} parent=11 // pred_region
          _
        $region24: #{tpu_custom_call.1} parent=11 // pred_fallthru
          _
      $region12: #{tpu_custom_call.1} parent=5 // pred_fallthru
        _
      %p222 = scmp.lt.s32.totalorder %s15, 2
      // Predicated region
      $region25: #{tpu_custom_call.1} parent=5 // pred_check
        %p223 = pneg %p222
      $region26: #{tpu_custom_call.1} parent=5 // pred_check_branch
        %225 = sbr.rel (%p223) target = $region28
      $region27: #{tpu_custom_call.1} parent=5 // pred_region
        // Predicated region
        $region29: #{tpu_custom_call.1} parent=27 // pred_check
          %p226 = pneg %p49
        $region30: #{tpu_custom_call.1} parent=27 // pred_check_branch
          %228 = sbr.rel (%p226) target = $region32
        $region31: #{tpu_custom_call.1} parent=27 // pred_region
          %p229 = scmp.lt.s32.totalorder %s22, 1
          %s230 = scalar_select %p229, %s22, 1
          %p231 = scmp.lt.s32.totalorder %s23, 0
          %s232 = scalar_select %p231, %s23, 0
          %s233 = sadd.s32 %s232, %s230
          %s234 = smul.addr %s233, 8
          %s235 = scalar_lea.vmem %s0, %s234
        $region32: #{tpu_custom_call.1} parent=27 // pred_fallthru
          _
        // Predicated region
        $region33: #{tpu_custom_call.1} parent=27 // pred_check
          %p236 = pneg %p75
        $region34: #{tpu_custom_call.1} parent=27 // pred_check_branch
          %238 = sbr.rel (%p236) target = $region36
        $region35: #{tpu_custom_call.1} parent=27 // pred_region
          %p239 = scmp.lt.s32.totalorder %s22, 1
          %s240 = scalar_select %p239, %s22, 1
          %s241 = smul.addr %s240, 16
          %s242 = smul.addr %s241, 4
          %s243 = scalar_lea.vmem %s1, %s242
        $region36: #{tpu_custom_call.1} parent=27 // pred_fallthru
          _
        // Predicated region
        $region37: #{tpu_custom_call.1} parent=27 // pred_check
          %p244 = pneg %p101
        $region38: #{tpu_custom_call.1} parent=27 // pred_check_branch
          %246 = sbr.rel (%p244) target = $region40
        $region39: #{tpu_custom_call.1} parent=27 // pred_region
          %p247 = scmp.lt.s32.totalorder %s22, 1
          %s248 = scalar_select %p247, %s22, 1
          %s249 = smul.addr %s248, 16
          %s250 = smul.addr %s249, 4
          %s251 = scalar_lea.vmem %s2, %s250
        $region40: #{tpu_custom_call.1} parent=27 // pred_fallthru
          _
      $region28: #{tpu_custom_call.1} parent=5 // pred_fallthru
        _
      %p252 = scmp.le.s32.totalorder 1, %s15
      %p253 = scmp.lt.s32.totalorder %s15, 3
      %p254 = pnand %p252, %p253
      %p255 = pneg %p254
      // Predicated region
      $region41: #{tpu_custom_call.1} parent=5 // pred_check
        _
      $region42: #{tpu_custom_call.1} parent=5 // pred_check_branch
        %257 = sbr.rel (%p254) target = $region44
      $region43: #{tpu_custom_call.1} parent=5 // pred_region
        %s258 = ssub.s32 %s15, 1
        %p259 = scmp.lt.s32.totalorder %s24, 1
        %s260 = scalar_select %p259, %s24, 1
        %p261 = scmp.lt.s32.totalorder %s25, 0
        %s262 = scalar_select %p261, %s25, 0
        %s263 = sadd.s32 %s262, %s260
        %s264 = smul.addr %s263, 8
        %s265 = scalar_lea.vmem %s0, %s264
        %p266 = pneg %p55
        %p267 = pneg %p52
        %p268 = scmp.lt.s32.totalorder %s24, 1
        %s269 = scalar_select %p268, %s24, 1
        %s270 = smul.addr %s269, 16
        %s271 = smul.addr %s270, 4
        %s272 = scalar_lea.vmem %s1, %s271
        %p273 = pneg %p81
        %p274 = pneg %p78
        %p275 = scmp.lt.s32.totalorder %s24, 1
        %s276 = scalar_select %p275, %s24, 1
        %s277 = smul.addr %s276, 16
        %s278 = smul.addr %s277, 4
        %s279 = scalar_lea.vmem %s2, %s278
        %p280 = pneg %p107
        %p281 = pneg %p104
        %p282 = pneg %p128
        %p283 = pneg %p125
        %p284 = pneg %p149
        %p285 = pneg %p146
        %p286 = pneg %p170
        %p287 = pneg %p167
        %p288 = pneg %p198
        %p289 = pneg %p195
        %s290 = sand.u32 %s185, 1
        %s291 = scalar_lea.sflag [#allocation4], %s290
        %s292 = sand.u32 %s185, 1
        %s293 = smul.addr %s292, 8
        %s294 = scalar_lea.vmem [#allocation3], %s293
        %p295 = scmp.lt.s32.totalorder %s24, 1
        %s296 = scalar_select %p295, %s24, 1
        %p297 = scmp.lt.s32.totalorder %s25, 0
        %s298 = scalar_select %p297, %s25, 0
        %s299 = sadd.s32 %s298, %s296
        %s300 = smul.addr %s299, 8
        %s301 = scalar_lea.vmem %s0, %s300
        %p302 = scmp.lt.s32.totalorder %s24, 1
        %s303 = scalar_select %p302, %s24, 1
        %s304 = smul.addr %s303, 16
        %s305 = smul.addr %s304, 4
        %s306 = scalar_lea.vmem %s1, %s305
        %p307 = scmp.lt.s32.totalorder %s24, 1
        %s308 = scalar_select %p307, %s24, 1
        %s309 = smul.addr %s308, 16
        %s310 = smul.addr %s309, 4
        %s311 = scalar_lea.vmem %s2, %s310
        %v313 = vld [vmem:[%s301] sm:$0xff]
        %v314 = vpack.c.bf16 %v313, %v313
        %v315 = vld [vmem:[%s3] sm:$0xf]
        %v316 = vld [vmem:[%s3 + $0x4] sm:$0xf]
        %v317 = vld [vmem:[%s3 + $0x8] sm:$0xf]
        %v318 = vld [vmem:[%s3 + $0xc] sm:$0xf]
        %v323 = vunpack.c.l.b16 %v315
        %v324 = vunpack.c.l.b16 %v316
        %v325 = vunpack.c.l.b16 %v317
        %v326 = vunpack.c.l.b16 %v318
        %v327 = vpack.c.b16 %v324, %v323
        %v328 = vpack.c.b16 %v326, %v325
        %vm331 = vcmask 261120
        %v333 = vsel %vm331, %v314, 0
        %335 = vmatprep.subr.bf16.mxu0 0
        %336 = vmatpush1.bf16.msra.mxu0 %v327
        %337 = vmatprep.subr.bf16.mxu0 0
        %338 = vmatpush1.bf16.msra.mxu0 %v328
        %339 = vmatprep.subr.bf16.mxu0 0
        %340 = vmatpush1.bf16.msra.mxu0 0
        %341 = vmatprep.subr.bf16.mxu0 0
        %342 = vmatpush1.bf16.msra.mxu0 0
        %343 = vmatprep.subr.bf16.mxu0 0
        %344 = vmatpush1.bf16.msra.mxu0 0
        %345 = vmatprep.subr.bf16.mxu0 0
        %346 = vmatpush1.bf16.msra.mxu0 0
        %347 = vmatprep.subr.bf16.mxu0 0
        %348 = vmatpush1.bf16.msra.mxu0 0
        %349 = vmatprep.subr.bf16.mxu0 0
        %350 = vmatpush1.bf16.msra.mxu0 0
        %351 = vmatprep.subr.bf16.mxu0 0
        %352 = vmatpush1.bf16.msra.mxu0 0
        %353 = vmatprep.subr.bf16.mxu0 0
        %354 = vmatpush1.bf16.msra.mxu0 0
        %355 = vmatprep.subr.bf16.mxu0 0
        %356 = vmatpush1.bf16.msra.mxu0 0
        %357 = vmatprep.subr.bf16.mxu0 0
        %358 = vmatpush1.bf16.msra.mxu0 0
        %359 = vmatprep.subr.bf16.mxu0 0
        %360 = vmatpush1.bf16.msra.mxu0 0
        %361 = vmatprep.subr.bf16.mxu0 0
        %362 = vmatpush1.bf16.msra.mxu0 0
        %363 = vmatprep.subr.bf16.mxu0 0
        %364 = vmatpush1.bf16.msra.mxu0 0
        %365 = vmatprep.subr.bf16.mxu0 0
        %366 = vmatpush1.bf16.msra.mxu0 0
        %367 = vmatprep.mubr.bf16.mxu0 0
        %368 = vmatmul.mubr.bf16.gmra.mrb[0].mxu0 %v333
        %v369 = vpop.f32.mrb[0].mxu0
        %v370 = vadd.f32 0.0, %v369
        %v371 = vpop.f32.mrb[0].mxu0
        %v372 = vpop.f32.mrb[0].mxu0
        %v373 = vpop.f32.mrb[0].mxu0
        %374 = vdwg.mxu0
        %v375 = vmul.f32 %v370, 0.25
        %v376 = vpack.c.bf16 %v375, %v375
        %v377 = vld [vmem:[%s306] sm:$0xf]
        %v378 = vld [vmem:[%s306 + $0x4] sm:$0xf]
        %v379 = vld [vmem:[%s306 + $0x8] sm:$0xf]
        %v380 = vld [vmem:[%s306 + $0xc] sm:$0xf]
        %v381 = vld [vmem:[%s306 + $0x10] sm:$0xf]
        %v382 = vld [vmem:[%s306 + $0x14] sm:$0xf]
        %v383 = vld [vmem:[%s306 + $0x18] sm:$0xf]
        %v384 = vld [vmem:[%s306 + $0x1c] sm:$0xf]
        %v385 = vld [vmem:[%s306 + $0x20] sm:$0xf]
        %v386 = vld [vmem:[%s306 + $0x24] sm:$0xf]
        %v387 = vld [vmem:[%s306 + $0x28] sm:$0xf]
        %v388 = vld [vmem:[%s306 + $0x2c] sm:$0xf]
        %v389 = vld [vmem:[%s306 + $0x30] sm:$0xf]
        %v390 = vld [vmem:[%s306 + $0x34] sm:$0xf]
        %v391 = vld [vmem:[%s306 + $0x38] sm:$0xf]
        %v392 = vld [vmem:[%s306 + $0x3c] sm:$0xf]
        %v393 = vld [vmem:[%s311] sm:$0xf]
        %v394 = vld [vmem:[%s311 + $0x4] sm:$0xf]
        %v395 = vld [vmem:[%s311 + $0x8] sm:$0xf]
        %v396 = vld [vmem:[%s311 + $0xc] sm:$0xf]
        %v397 = vld [vmem:[%s311 + $0x10] sm:$0xf]
        %v398 = vld [vmem:[%s311 + $0x14] sm:$0xf]
        %v399 = vld [vmem:[%s311 + $0x18] sm:$0xf]
        %v400 = vld [vmem:[%s311 + $0x1c] sm:$0xf]
        %v401 = vld [vmem:[%s311 + $0x20] sm:$0xf]
        %v402 = vld [vmem:[%s311 + $0x24] sm:$0xf]
        %v403 = vld [vmem:[%s311 + $0x28] sm:$0xf]
        %v404 = vld [vmem:[%s311 + $0x2c] sm:$0xf]
        %v405 = vld [vmem:[%s311 + $0x30] sm:$0xf]
        %v406 = vld [vmem:[%s311 + $0x34] sm:$0xf]
        %v407 = vld [vmem:[%s311 + $0x38] sm:$0xf]
        %v408 = vld [vmem:[%s311 + $0x3c] sm:$0xf]
        %v425 = vunpack.c.l.b16 %v377
        %v426 = vunpack.c.l.b16 %v378
        %v427 = vunpack.c.l.b16 %v379
        %v428 = vunpack.c.l.b16 %v380
        %v429 = vunpack.c.l.b16 %v381
        %v430 = vunpack.c.l.b16 %v382
        %v431 = vunpack.c.l.b16 %v383
        %v432 = vunpack.c.l.b16 %v384
        %v433 = vunpack.c.l.b16 %v385
        %v434 = vunpack.c.l.b16 %v386
        %v435 = vunpack.c.l.b16 %v387
        %v436 = vunpack.c.l.b16 %v388
        %v437 = vunpack.c.l.b16 %v389
        %v438 = vunpack.c.l.b16 %v390
        %v439 = vunpack.c.l.b16 %v391
        %v440 = vunpack.c.l.b16 %v392
        %v441 = vpack.c.b16 %v426, %v425
        %v442 = vpack.c.b16 %v428, %v427
        %v443 = vpack.c.b16 %v430, %v429
        %v444 = vpack.c.b16 %v432, %v431
        %v445 = vpack.c.b16 %v434, %v433
        %v446 = vpack.c.b16 %v436, %v435
        %v447 = vpack.c.b16 %v438, %v437
        %v448 = vpack.c.b16 %v440, %v439
        %vm449 = vcmask 130048
        %v451 = vsel %vm449, %v376, 0
        %v454 = vsel %vm449, %v441, 0
        %v457 = vsel %vm449, %v442, 0
        %v460 = vsel %vm449, %v443, 0
        %v463 = vsel %vm449, %v444, 0
        %v466 = vsel %vm449, %v445, 0
        %v469 = vsel %vm449, %v446, 0
        %v472 = vsel %vm449, %v447, 0
        %v475 = vsel %vm449, %v448, 0
        %477 = vmatprep.subr.bf16.mxu0 0
        %478 = vmatpush1.bf16.xpose.msra.mxu0 %v454
        %479 = vmatprep.subr.bf16.mxu0 0
        %480 = vmatpush1.bf16.xpose.msra.mxu0 %v457
        %481 = vmatprep.subr.bf16.mxu0 0
        %482 = vmatpush1.bf16.xpose.msra.mxu0 %v460
        %483 = vmatprep.subr.bf16.mxu0 0
        %484 = vmatpush1.bf16.xpose.msra.mxu0 %v463
        %485 = vmatprep.subr.bf16.mxu0 0
        %486 = vmatpush1.bf16.xpose.msra.mxu0 %v466
        %487 = vmatprep.subr.bf16.mxu0 0
        %488 = vmatpush1.bf16.xpose.msra.mxu0 %v469
        %489 = vmatprep.subr.bf16.mxu0 0
        %490 = vmatpush1.bf16.xpose.msra.mxu0 %v472
        %491 = vmatprep.subr.bf16.mxu0 0
        %492 = vmatpush1.bf16.xpose.msra.mxu0 %v475
        %493 = vmatprep.subr.bf16.mxu0 0
        %494 = vmatpush1.bf16.xpose.msra.mxu0 0
        %495 = vmatprep.subr.bf16.mxu0 0
        %496 = vmatpush1.bf16.xpose.msra.mxu0 0
        %497 = vmatprep.subr.bf16.mxu0 0
        %498 = vmatpush1.bf16.xpose.msra.mxu0 0
        %499 = vmatprep.subr.bf16.mxu0 0
        %500 = vmatpush1.bf16.xpose.msra.mxu0 0
        %501 = vmatprep.subr.bf16.mxu0 0
        %502 = vmatpush1.bf16.xpose.msra.mxu0 0
        %503 = vmatprep.subr.bf16.mxu0 0
        %504 = vmatpush1.bf16.xpose.msra.mxu0 0
        %505 = vmatprep.subr.bf16.mxu0 0
        %506 = vmatpush1.bf16.xpose.msra.mxu0 0
        %507 = vmatprep.subr.bf16.mxu0 0
        %508 = vmatpush1.bf16.xpose.msra.mxu0 0
        %509 = vmatprep.mubr.bf16.mxu0 0
        %510 = vmatmul.mubr.bf16.gmra.mrb[0].mxu0 %v451
        %v511 = vpop.f32.mrb[0].mxu0
        %v512 = vadd.f32 0.0, %v511
        %v513 = vpop.f32.mrb[0].mxu0
        %v514 = vpop.f32.mrb[0].mxu0
        %v515 = vpop.f32.mrb[0].mxu0
        %516 = vdwg.mxu0
        %v517 = vlaneseq
        %v518 = vand.u32 %v517, 127
        %vm519 = vcmp.lt.s32.totalorder %v518, 8
        %v520 = vsel %vm519, %v512, -1e+30
        %521 = vmax.xlane.f32.xlu0 %v520
        %v522 = vpop.xlane.xlu0 %521
        %v523 = vsub.f32 %v520, %v522
        %v524 = vmul.f32 %v523, 1.442695
        %v525 = vpow.pop %v524
        %526 = vadd.xlane.f32.xlu0 %v525
        %v527 = vpop.xlane.xlu0 %526
        %v528 = vrcp.pop %v527
        %v529 = vmul.f32 %v525, %v528
        %v530 = vpack.c.bf16 %v529, %v529
        %v547 = vunpack.c.l.b16 %v393
        %v548 = vunpack.c.l.b16 %v394
        %v549 = vunpack.c.l.b16 %v395
        %v550 = vunpack.c.l.b16 %v396
        %v551 = vunpack.c.l.b16 %v397
        %v552 = vunpack.c.l.b16 %v398
        %v553 = vunpack.c.l.b16 %v399
        %v554 = vunpack.c.l.b16 %v400
        %v555 = vunpack.c.l.b16 %v401
        %v556 = vunpack.c.l.b16 %v402
        %v557 = vunpack.c.l.b16 %v403
        %v558 = vunpack.c.l.b16 %v404
        %v559 = vunpack.c.l.b16 %v405
        %v560 = vunpack.c.l.b16 %v406
        %v561 = vunpack.c.l.b16 %v407
        %v562 = vunpack.c.l.b16 %v408
        %v563 = vpack.c.b16 %v548, %v547
        %v564 = vpack.c.b16 %v550, %v549
        %v565 = vpack.c.b16 %v552, %v551
        %v566 = vpack.c.b16 %v554, %v553
        %v567 = vpack.c.b16 %v556, %v555
        %v568 = vpack.c.b16 %v558, %v557
        %v569 = vpack.c.b16 %v560, %v559
        %v570 = vpack.c.b16 %v562, %v561
        %579 = vmatprep.subr.bf16.mxu0 0
        %580 = vmatpush1.bf16.msra.mxu0 %v563
        %581 = vmatprep.subr.bf16.mxu0 0
        %582 = vmatpush1.bf16.msra.mxu0 %v564
        %583 = vmatprep.subr.bf16.mxu0 0
        %584 = vmatpush1.bf16.msra.mxu0 %v565
        %585 = vmatprep.subr.bf16.mxu0 0
        %586 = vmatpush1.bf16.msra.mxu0 %v566
        %587 = vmatprep.subr.bf16.mxu0 0
        %588 = vmatpush1.bf16.msra.mxu0 %v567
        %589 = vmatprep.subr.bf16.mxu0 0
        %590 = vmatpush1.bf16.msra.mxu0 %v568
        %591 = vmatprep.subr.bf16.mxu0 0
        %592 = vmatpush1.bf16.msra.mxu0 %v569
        %593 = vmatprep.subr.bf16.mxu0 0
        %594 = vmatpush1.bf16.msra.mxu0 %v570
        %595 = vmatprep.subr.bf16.mxu0 0
        %596 = vmatpush1.bf16.msra.mxu0 0
        %597 = vmatprep.subr.bf16.mxu0 0
        %598 = vmatpush1.bf16.msra.mxu0 0
        %599 = vmatprep.subr.bf16.mxu0 0
        %600 = vmatpush1.bf16.msra.mxu0 0
        %601 = vmatprep.subr.bf16.mxu0 0
        %602 = vmatpush1.bf16.msra.mxu0 0
        %603 = vmatprep.subr.bf16.mxu0 0
        %604 = vmatpush1.bf16.msra.mxu0 0
        %605 = vmatprep.subr.bf16.mxu0 0
        %606 = vmatpush1.bf16.msra.mxu0 0
        %607 = vmatprep.subr.bf16.mxu0 0
        %608 = vmatpush1.bf16.msra.mxu0 0
        %609 = vmatprep.subr.bf16.mxu0 0
        %610 = vmatpush1.bf16.msra.mxu0 0
        %611 = vmatprep.mubr.bf16.mxu0 0
        %612 = vmatmul.mubr.bf16.gmra.mrb[0].mxu0 %v530
        %v613 = vpop.f32.mrb[0].mxu0
        %v614 = vadd.f32 0.0, %v613
        %v615 = vpop.f32.mrb[0].mxu0
        %v616 = vpop.f32.mrb[0].mxu0
        %v617 = vpop.f32.mrb[0].mxu0
        %618 = vdwg.mxu0
        %619 = vst.msk [vmem:[#allocation2] sm:$0xff] %vm449, %v614
        %621 = vrot.lane.b32.xlu0 %v376, 112
        %v622 = vpop.permute.xlu0 %621
        %623 = vrot.lane.b32.xlu0 %v441, 112
        %v624 = vpop.permute.xlu0 %623
        %625 = vrot.lane.b32.xlu0 %v442, 112
        %v626 = vpop.permute.xlu0 %625
        %627 = vrot.lane.b32.xlu0 %v443, 112
        %v628 = vpop.permute.xlu0 %627
        %629 = vrot.lane.b32.xlu0 %v444, 112
        %v630 = vpop.permute.xlu0 %629
        %631 = vrot.lane.b32.xlu0 %v445, 112
        %v632 = vpop.permute.xlu0 %631
        %633 = vrot.lane.b32.xlu0 %v446, 112
        %v634 = vpop.permute.xlu0 %633
        %635 = vrot.lane.b32.xlu0 %v447, 112
        %v636 = vpop.permute.xlu0 %635
        %637 = vrot.lane.b32.xlu0 %v448, 112
        %v638 = vpop.permute.xlu0 %637
        %v640 = vsel %vm449, %v622, 0
        %v643 = vsel %vm449, %v624, 0
        %v646 = vsel %vm449, %v626, 0
        %v649 = vsel %vm449, %v628, 0
        %v652 = vsel %vm449, %v630, 0
        %v655 = vsel %vm449, %v632, 0
        %v658 = vsel %vm449, %v634, 0
        %v661 = vsel %vm449, %v636, 0
        %v664 = vsel %vm449, %v638, 0
        %666 = vmatprep.subr.bf16.mxu0 0
        %667 = vmatpush1.bf16.xpose.msra.mxu0 %v643
        %668 = vmatprep.subr.bf16.mxu0 0
        %669 = vmatpush1.bf16.xpose.msra.mxu0 %v646
        %670 = vmatprep.subr.bf16.mxu0 0
        %671 = vmatpush1.bf16.xpose.msra.mxu0 %v649
        %672 = vmatprep.subr.bf16.mxu0 0
        %673 = vmatpush1.bf16.xpose.msra.mxu0 %v652
        %674 = vmatprep.subr.bf16.mxu0 0
        %675 = vmatpush1.bf16.xpose.msra.mxu0 %v655
        %676 = vmatprep.subr.bf16.mxu0 0
        %677 = vmatpush1.bf16.xpose.msra.mxu0 %v658
        %678 = vmatprep.subr.bf16.mxu0 0
        %679 = vmatpush1.bf16.xpose.msra.mxu0 %v661
        %680 = vmatprep.subr.bf16.mxu0 0
        %681 = vmatpush1.bf16.xpose.msra.mxu0 %v664
        %682 = vmatprep.subr.bf16.mxu0 0
        %683 = vmatpush1.bf16.xpose.msra.mxu0 0
        %684 = vmatprep.subr.bf16.mxu0 0
        %685 = vmatpush1.bf16.xpose.msra.mxu0 0
        %686 = vmatprep.subr.bf16.mxu0 0
        %687 = vmatpush1.bf16.xpose.msra.mxu0 0
        %688 = vmatprep.subr.bf16.mxu0 0
        %689 = vmatpush1.bf16.xpose.msra.mxu0 0
        %690 = vmatprep.subr.bf16.mxu0 0
        %691 = vmatpush1.bf16.xpose.msra.mxu0 0
        %692 = vmatprep.subr.bf16.mxu0 0
        %693 = vmatpush1.bf16.xpose.msra.mxu0 0
        %694 = vmatprep.subr.bf16.mxu0 0
        %695 = vmatpush1.bf16.xpose.msra.mxu0 0
        %696 = vmatprep.subr.bf16.mxu0 0
        %697 = vmatpush1.bf16.xpose.msra.mxu0 0
        %698 = vmatprep.mubr.bf16.mxu0 0
        %699 = vmatmul.mubr.bf16.gmra.mrb[0].mxu0 %v640
        %v700 = vpop.f32.mrb[0].mxu0
        %v701 = vadd.f32 0.0, %v700
        %v702 = vpop.f32.mrb[0].mxu0
        %v703 = vpop.f32.mrb[0].mxu0
        %v704 = vpop.f32.mrb[0].mxu0
        %705 = vdwg.mxu0
        %v706 = vsel %vm519, %v701, -1e+30
        %707 = vmax.xlane.f32.xlu0 %v706
        %v708 = vpop.xlane.xlu0 %707
        %v709 = vsub.f32 %v706, %v708
        %v710 = vmul.f32 %v709, 1.442695
        %v711 = vpow.pop %v710
        %712 = vadd.xlane.f32.xlu0 %v711
        %v713 = vpop.xlane.xlu0 %712
        %v714 = vrcp.pop %v713
        %v715 = vmul.f32 %v711, %v714
        %v716 = vpack.c.bf16 %v715, %v715
        %717 = vrot.lane.b32.xlu0 %v563, 112
        %v718 = vpop.permute.xlu0 %717
        %719 = vrot.lane.b32.xlu0 %v564, 112
        %v720 = vpop.permute.xlu0 %719
        %721 = vrot.lane.b32.xlu0 %v565, 112
        %v722 = vpop.permute.xlu0 %721
        %723 = vrot.lane.b32.xlu0 %v566, 112
        %v724 = vpop.permute.xlu0 %723
        %725 = vrot.lane.b32.xlu0 %v567, 112
        %v726 = vpop.permute.xlu0 %725
        %727 = vrot.lane.b32.xlu0 %v568, 112
        %v728 = vpop.permute.xlu0 %727
        %729 = vrot.lane.b32.xlu0 %v569, 112
        %v730 = vpop.permute.xlu0 %729
        %731 = vrot.lane.b32.xlu0 %v570, 112
        %v732 = vpop.permute.xlu0 %731
        %741 = vmatprep.subr.bf16.mxu0 0
        %742 = vmatpush1.bf16.msra.mxu0 %v718
        %743 = vmatprep.subr.bf16.mxu0 0
        %744 = vmatpush1.bf16.msra.mxu0 %v720
        %745 = vmatprep.subr.bf16.mxu0 0
        %746 = vmatpush1.bf16.msra.mxu0 %v722
        %747 = vmatprep.subr.bf16.mxu0 0
        %748 = vmatpush1.bf16.msra.mxu0 %v724
        %749 = vmatprep.subr.bf16.mxu0 0
        %750 = vmatpush1.bf16.msra.mxu0 %v726
        %751 = vmatprep.subr.bf16.mxu0 0
        %752 = vmatpush1.bf16.msra.mxu0 %v728
        %753 = vmatprep.subr.bf16.mxu0 0
        %754 = vmatpush1.bf16.msra.mxu0 %v730
        %755 = vmatprep.subr.bf16.mxu0 0
        %756 = vmatpush1.bf16.msra.mxu0 %v732
        %757 = vmatprep.subr.bf16.mxu0 0
        %758 = vmatpush1.bf16.msra.mxu0 0
        %759 = vmatprep.subr.bf16.mxu0 0
        %760 = vmatpush1.bf16.msra.mxu0 0
        %761 = vmatprep.subr.bf16.mxu0 0
        %762 = vmatpush1.bf16.msra.mxu0 0
        %763 = vmatprep.subr.bf16.mxu0 0
        %764 = vmatpush1.bf16.msra.mxu0 0
        %765 = vmatprep.subr.bf16.mxu0 0
        %766 = vmatpush1.bf16.msra.mxu0 0
        %767 = vmatprep.subr.bf16.mxu0 0
        %768 = vmatpush1.bf16.msra.mxu0 0
        %769 = vmatprep.subr.bf16.mxu0 0
        %770 = vmatpush1.bf16.msra.mxu0 0
        %771 = vmatprep.subr.bf16.mxu0 0
        %772 = vmatpush1.bf16.msra.mxu0 0
        %773 = vmatprep.mubr.bf16.mxu0 0
        %774 = vmatmul.mubr.bf16.gmra.mrb[0].mxu0 %v716
        %v775 = vpop.f32.mrb[0].mxu0
        %v776 = vadd.f32 0.0, %v775
        %v777 = vpop.f32.mrb[0].mxu0
        %v778 = vpop.f32.mrb[0].mxu0
        %v779 = vpop.f32.mrb[0].mxu0
        %780 = vdwg.mxu0
        %782 = vrot.lane.b32.xlu0 %v776, 16
        %v783 = vpop.permute.xlu0 %782
        %vm785 = vcmask 261248
        %786 = vst.msk [vmem:[#allocation2] sm:$0xff] %vm785, %v783
        %v787 = vld [vmem:[#allocation2] sm:$0xff]
        %v788 = vpack.c.bf16 %v787, %v787
        %v789 = vld [vmem:[%s4] sm:$0xf]
        %v790 = vld [vmem:[%s4 + $0x4] sm:$0xf]
        %v791 = vld [vmem:[%s4 + $0x8] sm:$0xf]
        %v792 = vld [vmem:[%s4 + $0xc] sm:$0xf]
        %v793 = vld [vmem:[%s5] sm:$0x1]
        %v795 = vlaneseq
        %v796 = vshrl.u32 %v795, 7
        %v797 = vsub.s32 0, %v796
        %v798 = vrot.slane %v793, %v797
        %v804 = vunpack.c.l.b16 %v789
        %v805 = vunpack.c.l.b16 %v790
        %v806 = vunpack.c.l.b16 %v791
        %v807 = vunpack.c.l.b16 %v792
        %v808 = vpack.c.b16 %v805, %v804
        %v809 = vpack.c.b16 %v807, %v806
        %v813 = vsel %vm331, %v788, 0
        %815 = vmatprep.subr.bf16.mxu0 0
        %816 = vmatpush1.bf16.msra.mxu0 %v808
        %817 = vmatprep.subr.bf16.mxu0 0
        %818 = vmatpush1.bf16.msra.mxu0 %v809
        %819 = vmatprep.subr.bf16.mxu0 0
        %820 = vmatpush1.bf16.msra.mxu0 0
        %821 = vmatprep.subr.bf16.mxu0 0
        %822 = vmatpush1.bf16.msra.mxu0 0
        %823 = vmatprep.subr.bf16.mxu0 0
        %824 = vmatpush1.bf16.msra.mxu0 0
        %825 = vmatprep.subr.bf16.mxu0 0
        %826 = vmatpush1.bf16.msra.mxu0 0
        %827 = vmatprep.subr.bf16.mxu0 0
        %828 = vmatpush1.bf16.msra.mxu0 0
        %829 = vmatprep.subr.bf16.mxu0 0
        %830 = vmatpush1.bf16.msra.mxu0 0
        %831 = vmatprep.subr.bf16.mxu0 0
        %832 = vmatpush1.bf16.msra.mxu0 0
        %833 = vmatprep.subr.bf16.mxu0 0
        %834 = vmatpush1.bf16.msra.mxu0 0
        %835 = vmatprep.subr.bf16.mxu0 0
        %836 = vmatpush1.bf16.msra.mxu0 0
        %837 = vmatprep.subr.bf16.mxu0 0
        %838 = vmatpush1.bf16.msra.mxu0 0
        %839 = vmatprep.subr.bf16.mxu0 0
        %840 = vmatpush1.bf16.msra.mxu0 0
        %841 = vmatprep.subr.bf16.mxu0 0
        %842 = vmatpush1.bf16.msra.mxu0 0
        %843 = vmatprep.subr.bf16.mxu0 0
        %844 = vmatpush1.bf16.msra.mxu0 0
        %845 = vmatprep.subr.bf16.mxu0 0
        %846 = vmatpush1.bf16.msra.mxu0 0
        %847 = vmatprep.mubr.bf16.mxu0 0
        %848 = vmatmul.mubr.bf16.gmra.mrb[0].mxu0 %v813
        %v849 = vpop.f32.mrb[0].mxu0
        %v850 = vadd.f32 %v798, %v849
        %v851 = vpop.f32.mrb[0].mxu0
        %v852 = vpop.f32.mrb[0].mxu0
        %v853 = vpop.f32.mrb[0].mxu0
        %854 = vdwg.mxu0
        %855 = vst.msk [vmem:[%s294] sm:$0xff] %vm331, %v850
        %s856 = sand.u32 %s185, 1
        %s857 = scalar_lea.sflag [#allocation4], %s856
        %s858 = sand.u32 %s185, 1
        %s859 = smul.addr %s858, 8
        %s860 = scalar_lea.vmem [#allocation3], %s859
        // Predicated region
        $region45: #{tpu_custom_call.1} parent=43 // pred_check
          %p861 = pneg %p195
        $region46: #{tpu_custom_call.1} parent=43 // pred_check_branch
          %863 = sbr.rel (%p861) target = $region48
        $region47: #{tpu_custom_call.1} parent=43 // pred_region
          %s865 = ssub.s32 128, 128
          %866 = vsyncadd %s857, %s865
          %s867 = sadd.s32 %s25, %s24
          %s868 = smul.addr %s867, 128
          %s869 = scalar_lea.hbm %s6, %s868
          %s871 = sshll.u32 %s860, 4
          %s872 = int_to_ptr.vmem [resolvable:$true] %s871
          %874 = dma.vmem_to_hbm [thread:$0]  %s872, 128, %s869, %s857
        $region48: #{tpu_custom_call.1} parent=43 // pred_fallthru
          _
      $region44: #{tpu_custom_call.1} parent=5 // pred_fallthru
        _
      %p875 = scmp.le.s32.totalorder 2, %s15
      // Predicated region
      $region49: #{tpu_custom_call.1} parent=5 // pred_check
        %p876 = pneg %p875
      $region50: #{tpu_custom_call.1} parent=5 // pred_check_branch
        %878 = sbr.rel (%p876) target = $region52
      $region51: #{tpu_custom_call.1} parent=5 // pred_region
        %s879 = ssub.s32 %s15, 2
        // Predicated region
        $region53: #{tpu_custom_call.1} parent=51 // pred_check
          %p880 = pneg %p201
        $region54: #{tpu_custom_call.1} parent=51 // pred_check_branch
          %882 = sbr.rel (%p880) target = $region56
        $region55: #{tpu_custom_call.1} parent=51 // pred_region
          %s883 = sand.u32 %s186, 1
          %s884 = scalar_lea.sflag [#allocation4], %s883
          %s885 = sand.u32 %s186, 1
          %s886 = smul.addr %s885, 8
          %s887 = scalar_lea.vmem [#allocation3], %s886
          %888 = dma.done %s884, 128
        $region56: #{tpu_custom_call.1} parent=51 // pred_fallthru
          _
      $region52: #{tpu_custom_call.1} parent=5 // pred_fallthru
        _
    $region6: #{tpu_custom_call.1} parent=1 // loop_footer
      %s19 = sadd.s32 1, %s15
    $region7: #{tpu_custom_call.1} parent=1 // loop_footer_branch
      %14 = sbr.rel target = $region3
    $region8: #{tpu_custom_call.1} parent=1 // loop_exit
      _
    %889 = vsyncpa [#allocation4], 1
    %s890 = scalar_lea.sflag [#allocation4], 1
    %891 = vsyncpa %s890, 1

</llo_original>
